<compile_context>
chip_gen: v5e
topology: v5e:2x2
jax: 0.10.0
libtpu: 0.0.40
codegen_flags: <defaults>
</compile_context>

<pallas_src>
import jax
import jax.numpy as jnp
from jax.experimental import pallas as pl
from jax.experimental.pallas import tpu as pltpu


def _round_up(n, m):
    return ((n + m - 1) // m) * m


# ----------------------------------------------------------------------------
# kernel
# ----------------------------------------------------------------------------
def _vae_kernel(
    x_ref, eps_ref,
    w1_ref, b1_ref, w2_ref, b2_ref, w3_ref, b3_ref,
    w4_ref, b4_ref, w5_ref, b5_ref, w6_ref, b6_ref,
    recon_ref, head_ref,
):
    f32 = jnp.float32
    bf16 = jnp.bfloat16
    zp = eps_ref.shape[-1]  # padded latent width (lane-aligned)

    # ---- encoder (bf16 MXU inputs, f32 accumulation, f32 elementwise) ----
    # x_ref is already bf16 (cast once in the wrapper).
    h = jnp.dot(x_ref[...], w1_ref[...], preferred_element_type=f32) + b1_ref[...]
    h = jnp.maximum(h, 0.0)
    h = jnp.dot(h.astype(bf16), w2_ref[...], preferred_element_type=f32) + b2_ref[...]
    h = jnp.maximum(h, 0.0)

    # fused head: columns [0:zp) = mu (padded), [zp:2*zp) = log_var (padded)
    head = jnp.dot(h.astype(bf16), w3_ref[...], preferred_element_type=f32) + b3_ref[...]
    mu = head[:, :zp]
    log_var = head[:, zp:]

    # ---- sampling (reparameterization): z = eps * exp(0.5*log_var) + mu ----
    # padded lanes: mu=0, log_var=0, eps=0  ->  z padded lanes = 0
    z = eps_ref[...] * jnp.exp(0.5 * log_var) + mu

    # ---- decoder ----
    d = jnp.dot(z.astype(bf16), w4_ref[...], preferred_element_type=f32) + b4_ref[...]
    d = jnp.maximum(d, 0.0)
    d = jnp.dot(d.astype(bf16), w5_ref[...], preferred_element_type=f32) + b5_ref[...]
    d = jnp.maximum(d, 0.0)
    logits = jnp.dot(d.astype(bf16), w6_ref[...], preferred_element_type=f32) + b6_ref[...]

    recon_ref[...] = jax.nn.sigmoid(logits).astype(recon_ref.dtype)  # bf16 store
    head_ref[...] = head


# ----------------------------------------------------------------------------
# parameter packing (done ONCE): pad to 128-lane multiples, fuse head, cast bf16
# ----------------------------------------------------------------------------
def pack_params(p):
    x_dim, h1 = p["w1"].shape
    h2 = p["w2"].shape[1]
    z_dim = p["w31"].shape[1]
    xp, h1p, h2p, zp = (_round_up(d, 128) for d in (x_dim, h1, h2, z_dim))

    def pad_w(w, rp, cp):
        r, c = w.shape
        return jnp.pad(w, ((0, rp - r), (0, cp - c))).astype(jnp.bfloat16)

    def pad_b(b, cp):
        return jnp.pad(b, ((0, 0), (0, cp - b.shape[1]))).astype(jnp.float32)

    packed = dict(
        w1=pad_w(p["w1"], xp, h1p), b1=pad_b(p["b1"], h1p),
        w2=pad_w(p["w2"], h1p, h2p), b2=pad_b(p["b2"], h2p),
        # fused mu|log_var head, each half padded to zp lanes
        w3=jnp.concatenate([pad_w(p["w31"], h2p, zp), pad_w(p["w32"], h2p, zp)], axis=1),
        b3=jnp.concatenate([pad_b(p["b31"], zp), pad_b(p["b32"], zp)], axis=1),
        w4=pad_w(p["w4"], zp, h2p), b4=pad_b(p["b4"], h2p),
        w5=pad_w(p["w5"], h2p, h1p), b5=pad_b(p["b5"], h1p),
        w6=pad_w(p["w6"], h1p, xp), b6=pad_b(p["b6"], xp),
    )
    dims = dict(x_dim=x_dim, z_dim=z_dim, xp=xp, h1p=h1p, h2p=h2p, zp=zp)
    return packed, dims


# ----------------------------------------------------------------------------
# wrapper
# ----------------------------------------------------------------------------
def vae_forward_pallas(x, eps, packed, dims, *, tm=512):
    """x: (B, 1, 28, 28) or (B, 784); eps: (B, z_dim) ~ N(0, 1)."""
    x_dim, z_dim = dims["x_dim"], dims["z_dim"]
    xp, h1p, h2p, zp = dims["xp"], dims["h1p"], dims["h2p"], dims["zp"]

    x2d = x.reshape(-1, x_dim)
    B = x2d.shape[0]

    # bf16 input packs 16 sublanes/vreg -> keep tm a multiple of 16; don't
    # over-pad tiny batches.
    tm = min(tm, _round_up(B, 16))
    # v7x megacore: if the whole batch would land in a single grid step but is
    # big enough to split, halve the tile so both TensorCores get work.
    if B > 16 and _round_up(B, tm) == tm:
        tm = max(16, _round_up((tm + 1) // 2, 16))
    b_pad = _round_up(B, tm)

    # Stage x as bf16 in one fused expression (half-width HBM staging copy);
    # eps stays f32 (used only in f32 elementwise math, tiny).
    x_p = jnp.pad(x2d.astype(jnp.bfloat16), ((0, b_pad - B), (0, xp - x_dim)))
    eps_p = jnp.pad(eps.astype(jnp.float32), ((0, b_pad - B), (0, zp - z_dim)))

    grid = (b_pad // tm,)
    row_spec = lambda n: pl.BlockSpec((tm, n), lambda i: (i, 0))      # batch-tiled
    fix_spec = lambda shape: pl.BlockSpec(shape, lambda i: (0, 0))    # VMEM-resident

    in_specs = [
        row_spec(xp), row_spec(zp),
        fix_spec((xp, h1p)), fix_spec((1, h1p)),
        fix_spec((h1p, h2p)), fix_spec((1, h2p)),
        fix_spec((h2p, 2 * zp)), fix_spec((1, 2 * zp)),
        fix_spec((zp, h2p)), fix_spec((1, h2p)),
        fix_spec((h2p, h1p)), fix_spec((1, h1p)),
        fix_spec((h1p, xp)), fix_spec((1, xp)),
    ]
    out_specs = (row_spec(xp), row_spec(2 * zp))
    out_shape = (
        jax.ShapeDtypeStruct((b_pad, xp), jnp.bfloat16),      # recon (padded, bf16)
        jax.ShapeDtypeStruct((b_pad, 2 * zp), jnp.float32),   # [mu | log_var] (padded)
    )

    flops = 2 * b_pad * (xp * h1p + h1p * h2p + h2p * 2 * zp
                         + zp * h2p + h2p * h1p + h1p * xp)
    # exp(0.5*log_var) per latent lane; sigmoid = exp + reciprocal per pixel.
    transcendentals = b_pad * (zp + 2 * xp)
    param_bytes = sum(int(v.size) * v.dtype.itemsize for v in packed.values())
    io_bytes = (x_p.size * 2            # bf16 x
                + eps_p.size * 4        # f32 eps
                + b_pad * xp * 2        # bf16 recon
                + b_pad * 2 * zp * 4)   # f32 head
    cost = pl.CostEstimate(flops=int(flops), transcendentals=int(transcendentals),
                           bytes_accessed=int(param_bytes + io_bytes))

    recon_p, head_p = pl.pallas_call(
        _vae_kernel,
        grid=grid,
        in_specs=in_specs,
        out_specs=out_specs,
        out_shape=out_shape,
        compiler_params=pltpu.CompilerParams(
            dimension_semantics=("parallel",)),
        cost_estimate=cost,
    )(
        x_p, eps_p,
        packed["w1"], packed["b1"], packed["w2"], packed["b2"],
        packed["w3"], packed["b3"],
        packed["w4"], packed["b4"], packed["w5"], packed["b5"],
        packed["w6"], packed["b6"],
    )

    recon = recon_p[:B, :x_dim].astype(jnp.float32)   # upcast for callers
    mu = head_p[:B, :z_dim]
    log_var = head_p[:B, zp:zp + z_dim]
    return recon, mu, log_var


# ----------------------------------------------------------------------------
# init + reference
# ----------------------------------------------------------------------------
def init_params(key, x_dim=784, h_dim1=128, h_dim2=64, z_dim=20):
    """nn.Linear-style init (uniform +-1/sqrt(fan_in)); fc32.weight ~ U(-1, 1)."""
    def linear(k, fan_in, fan_out, wscale=None):
        kw, kb = jax.random.split(k)
        bound = 1.0 / jnp.sqrt(fan_in) if wscale is None else wscale
        w = jax.random.uniform(kw, (fan_in, fan_out), jnp.float32, -bound, bound)
        bb = 1.0 / jnp.sqrt(fan_in)
        b = jax.random.uniform(kb, (1, fan_out), jnp.float32, -bb, bb)
        return w, b

    ks = jax.random.split(key, 7)
    p = {}
    p["w1"], p["b1"] = linear(ks[0], x_dim, h_dim1)
    p["w2"], p["b2"] = linear(ks[1], h_dim1, h_dim2)
    p["w31"], p["b31"] = linear(ks[2], h_dim2, z_dim)
    p["w32"], p["b32"] = linear(ks[3], h_dim2, z_dim, wscale=1.0)  # uniform_(-1, 1)
    p["w4"], p["b4"] = linear(ks[4], z_dim, h_dim2)
    p["w5"], p["b5"] = linear(ks[5], h_dim2, h_dim1)
    p["w6"], p["b6"] = linear(ks[6], h_dim1, x_dim)
    return p


def vae_forward_ref(x, eps, p):
    """Pure-JAX reference using the same bf16-MXU / f32-accumulate recipe."""
    f32, bf = jnp.float32, (lambda a: a.astype(jnp.bfloat16))
    mm = lambda a, w: jnp.dot(bf(a), bf(w), preferred_element_type=f32)
    x2d = x.reshape(-1, p["w1"].shape[0]).astype(f32)
    h = jax.nn.relu(mm(x2d, p["w1"]) + p["b1"])
    h = jax.nn.relu(mm(h, p["w2"]) + p["b2"])
    mu = mm(h, p["w31"]) + p["b31"]
    log_var = mm(h, p["w32"]) + p["b32"]
    z = eps * jnp.exp(0.5 * log_var) + mu
    d = jax.nn.relu(mm(z, p["w4"]) + p["b4"])
    d = jax.nn.relu(mm(d, p["w5"]) + p["b5"])
    recon = jax.nn.sigmoid(mm(d, p["w6"]) + p["b6"])
    return recon, mu, log_var


if __name__ == "__main__":
    key = jax.random.PRNGKey(0)
    k_param, k_x, k_eps = jax.random.split(key, 3)

    B, Z = 8, 20
    params = init_params(k_param, x_dim=784, h_dim1=128, h_dim2=64, z_dim=Z)
    packed, dims = pack_params(params)   # pad + fuse head + bf16, once

    x = jax.random.uniform(k_x, (B, 1, 28, 28), jnp.float32)   # MNIST-like input
    eps = jax.random.normal(k_eps, (B, Z), jnp.float32)        # randn_like(std)

    # jit the whole forward so the bf16 staging / padding / output slicing
    # fuses with the pallas_call in one XLA program.
    fwd = jax.jit(lambda xx, ee: vae_forward_pallas(xx, ee, packed, dims))

    recon, mu, log_var = jax.block_until_ready(fwd(x, eps))
    recon_r, mu_r, log_var_r = vae_forward_ref(x, eps, params)

    assert recon.shape == (B, 784) and mu.shape == (B, Z) and log_var.shape == (B, Z)
    # recon is stored in bf16 (values in (0,1) -> abs roundoff <~ 2e-3)
    assert jnp.allclose(recon, recon_r, atol=4e-3, rtol=4e-3)
    assert jnp.allclose(mu, mu_r, atol=2e-3, rtol=2e-3)
    assert jnp.allclose(log_var, log_var_r, atol=2e-3, rtol=2e-3)

    print("KERNEL_OK")
</pallas_src>

<mosaic_0001>
module attributes {stable_mosaic.version = 11 : i64} {
  func.func @_vae_kernel(%arg0: i32, %arg1: memref<16x896xbf16, #tpu.memory_space<vmem>>, %arg2: memref<16x128xf32, #tpu.memory_space<vmem>>, %arg3: memref<896x128xbf16, #tpu.memory_space<vmem>>, %arg4: memref<1x128xf32, #tpu.memory_space<vmem>>, %arg5: memref<128x128xbf16, #tpu.memory_space<vmem>>, %arg6: memref<1x128xf32, #tpu.memory_space<vmem>>, %arg7: memref<128x256xbf16, #tpu.memory_space<vmem>>, %arg8: memref<1x256xf32, #tpu.memory_space<vmem>>, %arg9: memref<128x128xbf16, #tpu.memory_space<vmem>>, %arg10: memref<1x128xf32, #tpu.memory_space<vmem>>, %arg11: memref<128x128xbf16, #tpu.memory_space<vmem>>, %arg12: memref<1x128xf32, #tpu.memory_space<vmem>>, %arg13: memref<128x896xbf16, #tpu.memory_space<vmem>>, %arg14: memref<1x896xf32, #tpu.memory_space<vmem>>, %arg15: memref<16x896xbf16, #tpu.memory_space<vmem>>, %arg16: memref<16x256xf32, #tpu.memory_space<vmem>>) attributes {dimension_semantics = [#tpu.dimension_semantics<parallel>], iteration_bounds = array<i64: 1>, scalar_prefetch = 0 : i64, scratch_operands = 0 : i64, tpu.core_type = #tpu.core_type<tc>, window_params = [{transform_indices = @transform_0, window_bounds = array<i64: 16, 896>}, {transform_indices = @transform_1, window_bounds = array<i64: 16, 128>}, {pipeline_mode = #tpu.pipeline_mode<synchronous>, transform_indices = @transform_2, window_bounds = array<i64: 896, 128>}, {pipeline_mode = #tpu.pipeline_mode<synchronous>, transform_indices = @transform_3, window_bounds = array<i64: 1, 128>}, {pipeline_mode = #tpu.pipeline_mode<synchronous>, transform_indices = @transform_4, window_bounds = array<i64: 128, 128>}, {pipeline_mode = #tpu.pipeline_mode<synchronous>, transform_indices = @transform_5, window_bounds = array<i64: 1, 128>}, {pipeline_mode = #tpu.pipeline_mode<synchronous>, transform_indices = @transform_6, window_bounds = array<i64: 128, 256>}, {pipeline_mode = #tpu.pipeline_mode<synchronous>, transform_indices = @transform_7, window_bounds = array<i64: 1, 256>}, {pipeline_mode = #tpu.pipeline_mode<synchronous>, transform_indices = @transform_8, window_bounds = array<i64: 128, 128>}, {pipeline_mode = #tpu.pipeline_mode<synchronous>, transform_indices = @transform_9, window_bounds = array<i64: 1, 128>}, {pipeline_mode = #tpu.pipeline_mode<synchronous>, transform_indices = @transform_10, window_bounds = array<i64: 128, 128>}, {pipeline_mode = #tpu.pipeline_mode<synchronous>, transform_indices = @transform_11, window_bounds = array<i64: 1, 128>}, {pipeline_mode = #tpu.pipeline_mode<synchronous>, transform_indices = @transform_12, window_bounds = array<i64: 128, 896>}, {pipeline_mode = #tpu.pipeline_mode<synchronous>, transform_indices = @transform_13, window_bounds = array<i64: 1, 896>}, {transform_indices = @transform_14, window_bounds = array<i64: 16, 896>}, {transform_indices = @transform_15, window_bounds = array<i64: 16, 256>}]} {
    %c0 = arith.constant 0 : index
    %c0_0 = arith.constant 0 : index
    %0 = vector.load %arg1[%c0, %c0_0] : memref<16x896xbf16, #tpu.memory_space<vmem>>, vector<16x896xbf16>
    %c0_1 = arith.constant 0 : index
    %c0_2 = arith.constant 0 : index
    %1 = vector.load %arg3[%c0_1, %c0_2] : memref<896x128xbf16, #tpu.memory_space<vmem>>, vector<896x128xbf16>
    %cst = arith.constant dense<0.000000e+00> : vector<16x128xf32>
    %2 = tpu.matmul %0, %1, %cst {dimension_numbers = #tpu.dot_dimension_numbers<[1], [0], [0], [1], [0, 0, 1, 1], [], []>} : vector<16x896xbf16>, vector<896x128xbf16>, vector<16x128xf32> -> vector<16x128xf32>
    %c0_3 = arith.constant 0 : index
    %c0_4 = arith.constant 0 : index
    %3 = vector.load %arg4[%c0_3, %c0_4] : memref<1x128xf32, #tpu.memory_space<vmem>>, vector<1x128xf32>
    %4 = vector.broadcast %3 : vector<1x128xf32> to vector<16x128xf32>
    %5 = arith.addf %2, %4 : vector<16x128xf32>
    %cst_5 = arith.constant 0.000000e+00 : f32
    %6 = vector.broadcast %cst_5 : f32 to vector<16x128xf32>
    %7 = arith.maximumf %5, %6 : vector<16x128xf32>
    %8 = arith.truncf %7 : vector<16x128xf32> to vector<16x128xbf16>
    %c0_6 = arith.constant 0 : index
    %c0_7 = arith.constant 0 : index
    %9 = vector.load %arg5[%c0_6, %c0_7] : memref<128x128xbf16, #tpu.memory_space<vmem>>, vector<128x128xbf16>
    %cst_8 = arith.constant dense<0.000000e+00> : vector<16x128xf32>
    %10 = tpu.matmul %8, %9, %cst_8 {dimension_numbers = #tpu.dot_dimension_numbers<[1], [0], [0], [1], [0, 0, 1, 1], [], []>} : vector<16x128xbf16>, vector<128x128xbf16>, vector<16x128xf32> -> vector<16x128xf32>
    %c0_9 = arith.constant 0 : index
    %c0_10 = arith.constant 0 : index
    %11 = vector.load %arg6[%c0_9, %c0_10] : memref<1x128xf32, #tpu.memory_space<vmem>>, vector<1x128xf32>
    %12 = vector.broadcast %11 : vector<1x128xf32> to vector<16x128xf32>
    %13 = arith.addf %10, %12 : vector<16x128xf32>
    %cst_11 = arith.constant 0.000000e+00 : f32
    %14 = vector.broadcast %cst_11 : f32 to vector<16x128xf32>
    %15 = arith.maximumf %13, %14 : vector<16x128xf32>
    %16 = arith.truncf %15 : vector<16x128xf32> to vector<16x128xbf16>
    %c0_12 = arith.constant 0 : index
    %c0_13 = arith.constant 0 : index
    %17 = vector.load %arg7[%c0_12, %c0_13] : memref<128x256xbf16, #tpu.memory_space<vmem>>, vector<128x256xbf16>
    %cst_14 = arith.constant dense<0.000000e+00> : vector<16x256xf32>
    %18 = tpu.matmul %16, %17, %cst_14 {dimension_numbers = #tpu.dot_dimension_numbers<[1], [0], [0], [1], [0, 0, 1, 1], [], []>} : vector<16x128xbf16>, vector<128x256xbf16>, vector<16x256xf32> -> vector<16x256xf32>
    %c0_15 = arith.constant 0 : index
    %c0_16 = arith.constant 0 : index
    %19 = vector.load %arg8[%c0_15, %c0_16] : memref<1x256xf32, #tpu.memory_space<vmem>>, vector<1x256xf32>
    %20 = vector.broadcast %19 : vector<1x256xf32> to vector<16x256xf32>
    %21 = arith.addf %18, %20 : vector<16x256xf32>
    %22 = vector.extract_strided_slice %21 {offsets = [0, 0], sizes = [16, 128], strides = [1, 1]} : vector<16x256xf32> to vector<16x128xf32>
    %23 = vector.extract_strided_slice %21 {offsets = [0, 128], sizes = [16, 128], strides = [1, 1]} : vector<16x256xf32> to vector<16x128xf32>
    %c0_17 = arith.constant 0 : index
    %c0_18 = arith.constant 0 : index
    %24 = vector.load %arg2[%c0_17, %c0_18] : memref<16x128xf32, #tpu.memory_space<vmem>>, vector<16x128xf32>
    %cst_19 = arith.constant 5.000000e-01 : f32
    %25 = vector.broadcast %cst_19 : f32 to vector<16x128xf32>
    %26 = arith.mulf %25, %23 : vector<16x128xf32>
    %27 = math.exp %26 : vector<16x128xf32>
    %28 = arith.mulf %24, %27 : vector<16x128xf32>
    %29 = arith.addf %28, %22 : vector<16x128xf32>
    %30 = arith.truncf %29 : vector<16x128xf32> to vector<16x128xbf16>
    %c0_20 = arith.constant 0 : index
    %c0_21 = arith.constant 0 : index
    %31 = vector.load %arg9[%c0_20, %c0_21] : memref<128x128xbf16, #tpu.memory_space<vmem>>, vector<128x128xbf16>
    %cst_22 = arith.constant dense<0.000000e+00> : vector<16x128xf32>
    %32 = tpu.matmul %30, %31, %cst_22 {dimension_numbers = #tpu.dot_dimension_numbers<[1], [0], [0], [1], [0, 0, 1, 1], [], []>} : vector<16x128xbf16>, vector<128x128xbf16>, vector<16x128xf32> -> vector<16x128xf32>
    %c0_23 = arith.constant 0 : index
    %c0_24 = arith.constant 0 : index
    %33 = vector.load %arg10[%c0_23, %c0_24] : memref<1x128xf32, #tpu.memory_space<vmem>>, vector<1x128xf32>
    %34 = vector.broadcast %33 : vector<1x128xf32> to vector<16x128xf32>
    %35 = arith.addf %32, %34 : vector<16x128xf32>
    %cst_25 = arith.constant 0.000000e+00 : f32
    %36 = vector.broadcast %cst_25 : f32 to vector<16x128xf32>
    %37 = arith.maximumf %35, %36 : vector<16x128xf32>
    %38 = arith.truncf %37 : vector<16x128xf32> to vector<16x128xbf16>
    %c0_26 = arith.constant 0 : index
    %c0_27 = arith.constant 0 : index
    %39 = vector.load %arg11[%c0_26, %c0_27] : memref<128x128xbf16, #tpu.memory_space<vmem>>, vector<128x128xbf16>
    %cst_28 = arith.constant dense<0.000000e+00> : vector<16x128xf32>
    %40 = tpu.matmul %38, %39, %cst_28 {dimension_numbers = #tpu.dot_dimension_numbers<[1], [0], [0], [1], [0, 0, 1, 1], [], []>} : vector<16x128xbf16>, vector<128x128xbf16>, vector<16x128xf32> -> vector<16x128xf32>
    %c0_29 = arith.constant 0 : index
    %c0_30 = arith.constant 0 : index
    %41 = vector.load %arg12[%c0_29, %c0_30] : memref<1x128xf32, #tpu.memory_space<vmem>>, vector<1x128xf32>
    %42 = vector.broadcast %41 : vector<1x128xf32> to vector<16x128xf32>
    %43 = arith.addf %40, %42 : vector<16x128xf32>
    %cst_31 = arith.constant 0.000000e+00 : f32
    %44 = vector.broadcast %cst_31 : f32 to vector<16x128xf32>
    %45 = arith.maximumf %43, %44 : vector<16x128xf32>
    %46 = arith.truncf %45 : vector<16x128xf32> to vector<16x128xbf16>
    %c0_32 = arith.constant 0 : index
    %c0_33 = arith.constant 0 : index
    %47 = vector.load %arg13[%c0_32, %c0_33] : memref<128x896xbf16, #tpu.memory_space<vmem>>, vector<128x896xbf16>
    %cst_34 = arith.constant dense<0.000000e+00> : vector<16x896xf32>
    %48 = tpu.matmul %46, %47, %cst_34 {dimension_numbers = #tpu.dot_dimension_numbers<[1], [0], [0], [1], [0, 0, 1, 1], [], []>} : vector<16x128xbf16>, vector<128x896xbf16>, vector<16x896xf32> -> vector<16x896xf32>
    %c0_35 = arith.constant 0 : index
    %c0_36 = arith.constant 0 : index
    %49 = vector.load %arg14[%c0_35, %c0_36] : memref<1x896xf32, #tpu.memory_space<vmem>>, vector<1x896xf32>
    %50 = vector.broadcast %49 : vector<1x896xf32> to vector<16x896xf32>
    %51 = arith.addf %48, %50 : vector<16x896xf32>
    %52 = arith.negf %51 : vector<16x896xf32>
    %53 = math.exp %52 : vector<16x896xf32>
    %cst_37 = arith.constant 1.000000e+00 : f32
    %54 = vector.broadcast %cst_37 : f32 to vector<16x896xf32>
    %55 = arith.addf %54, %53 : vector<16x896xf32>
    %56 = arith.divf %54, %55 : vector<16x896xf32>
    %57 = arith.truncf %56 : vector<16x896xf32> to vector<16x896xbf16>
    %c0_38 = arith.constant 0 : index
    %c0_39 = arith.constant 0 : index
    %58 = vector.load %arg15[%c0_38, %c0_39] : memref<16x896xbf16, #tpu.memory_space<vmem>>, vector<16x896xbf16>
    tpu.vector_store %arg15[%c0_38, %c0_39], %57 {strides = array<i32>} : memref<16x896xbf16, #tpu.memory_space<vmem>>, vector<16x896xbf16>,
    %c0_40 = arith.constant 0 : index
    %c0_41 = arith.constant 0 : index
    %59 = vector.load %arg16[%c0_40, %c0_41] : memref<16x256xf32, #tpu.memory_space<vmem>>, vector<16x256xf32>
    tpu.vector_store %arg16[%c0_40, %c0_41], %21 {strides = array<i32>} : memref<16x256xf32, #tpu.memory_space<vmem>>, vector<16x256xf32>,
    return
  }
  func.func @transform_0(%arg0: i32) -> (i32, i32) {
    %c0_i32 = arith.constant 0 : i32
    %c0_i32_0 = arith.constant 0 : i32
    return %arg0, %c0_i32 : i32, i32
  }
  func.func @transform_1(%arg0: i32) -> (i32, i32) {
    %c0_i32 = arith.constant 0 : i32
    %c0_i32_0 = arith.constant 0 : i32
    return %arg0, %c0_i32 : i32, i32
  }
  func.func @transform_2(%arg0: i32) -> (i32, i32) {
    %c0_i32 = arith.constant 0 : i32
    %c0_i32_0 = arith.constant 0 : i32
    %c0_i32_1 = arith.constant 0 : i32
    return %c0_i32, %c0_i32_0 : i32, i32
  }
  func.func @transform_3(%arg0: i32) -> (i32, i32) {
    %c0_i32 = arith.constant 0 : i32
    %c0_i32_0 = arith.constant 0 : i32
    %c0_i32_1 = arith.constant 0 : i32
    return %c0_i32, %c0_i32_0 : i32, i32
  }
  func.func @transform_4(%arg0: i32) -> (i32, i32) {
    %c0_i32 = arith.constant 0 : i32
    %c0_i32_0 = arith.constant 0 : i32
    %c0_i32_1 = arith.constant 0 : i32
    return %c0_i32, %c0_i32_0 : i32, i32
  }
  func.func @transform_5(%arg0: i32) -> (i32, i32) {
    %c0_i32 = arith.constant 0 : i32
    %c0_i32_0 = arith.constant 0 : i32
    %c0_i32_1 = arith.constant 0 : i32
    return %c0_i32, %c0_i32_0 : i32, i32
  }
  func.func @transform_6(%arg0: i32) -> (i32, i32) {
    %c0_i32 = arith.constant 0 : i32
    %c0_i32_0 = arith.constant 0 : i32
    %c0_i32_1 = arith.constant 0 : i32
    return %c0_i32, %c0_i32_0 : i32, i32
  }
  func.func @transform_7(%arg0: i32) -> (i32, i32) {
    %c0_i32 = arith.constant 0 : i32
    %c0_i32_0 = arith.constant 0 : i32
    %c0_i32_1 = arith.constant 0 : i32
    return %c0_i32, %c0_i32_0 : i32, i32
  }
  func.func @transform_8(%arg0: i32) -> (i32, i32) {
    %c0_i32 = arith.constant 0 : i32
    %c0_i32_0 = arith.constant 0 : i32
    %c0_i32_1 = arith.constant 0 : i32
    return %c0_i32, %c0_i32_0 : i32, i32
  }
  func.func @transform_9(%arg0: i32) -> (i32, i32) {
    %c0_i32 = arith.constant 0 : i32
    %c0_i32_0 = arith.constant 0 : i32
    %c0_i32_1 = arith.constant 0 : i32
    return %c0_i32, %c0_i32_0 : i32, i32
  }
  func.func @transform_10(%arg0: i32) -> (i32, i32) {
    %c0_i32 = arith.constant 0 : i32
    %c0_i32_0 = arith.constant 0 : i32
    %c0_i32_1 = arith.constant 0 : i32
    return %c0_i32, %c0_i32_0 : i32, i32
  }
  func.func @transform_11(%arg0: i32) -> (i32, i32) {
    %c0_i32 = arith.constant 0 : i32
    %c0_i32_0 = arith.constant 0 : i32
    %c0_i32_1 = arith.constant 0 : i32
    return %c0_i32, %c0_i32_0 : i32, i32
  }
  func.func @transform_12(%arg0: i32) -> (i32, i32) {
    %c0_i32 = arith.constant 0 : i32
    %c0_i32_0 = arith.constant 0 : i32
    %c0_i32_1 = arith.constant 0 : i32
    return %c0_i32, %c0_i32_0 : i32, i32
  }
  func.func @transform_13(%arg0: i32) -> (i32, i32) {
    %c0_i32 = arith.constant 0 : i32
    %c0_i32_0 = arith.constant 0 : i32
    %c0_i32_1 = arith.constant 0 : i32
    return %c0_i32, %c0_i32_0 : i32, i32
  }
  func.func @transform_14(%arg0: i32) -> (i32, i32) {
    %c0_i32 = arith.constant 0 : i32
    %c0_i32_0 = arith.constant 0 : i32
    return %arg0, %c0_i32 : i32, i32
  }
  func.func @transform_15(%arg0: i32) -> (i32, i32) {
    %c0_i32 = arith.constant 0 : i32
    %c0_i32_0 = arith.constant 0 : i32
    return %arg0, %c0_i32 : i32, i32
  }
}

</mosaic_0001>

<llo_original>
// kernel: _lambda_.1
$region0: #{_lambda_.1}
  #allocation0 [shape = 'u32[]', space=smem, size = 0x4, offset = 0x4, fixed_abs, tag = 'smem constant byte address 0x4 - core index']
  #allocation1 [shape = 'u32[72,128]{1,0:T(1,128)}', space=vmem, size = 0x9000, scoped, tag = 'internal scratch']
  %s0 = inlined_call_operand.vmem [shape: bf16[16,896], index: 0, kind: input, shape index: {}]
  %s1 = inlined_call_operand.vmem [shape: f32[16,128], index: 1, kind: input, shape index: {}]
  %s2 = inlined_call_operand.vmem [shape: bf16[896,128], index: 2, kind: input, shape index: {}]
  %s3 = inlined_call_operand.vmem [shape: f32[1,128], index: 3, kind: input, shape index: {}]
  %s4 = inlined_call_operand.hbm [shape: bf16[128,128], index: 4, kind: input, shape index: {}]
  %s5 = inlined_call_operand.vmem [shape: f32[1,128], index: 5, kind: input, shape index: {}]
  %s6 = inlined_call_operand.vmem [shape: bf16[128,256], index: 6, kind: input, shape index: {}]
  %s7 = inlined_call_operand.vmem [shape: f32[1,256], index: 7, kind: input, shape index: {}]
  %s8 = inlined_call_operand.hbm [shape: bf16[128,128], index: 8, kind: input, shape index: {}]
  %s9 = inlined_call_operand.vmem [shape: f32[1,128], index: 9, kind: input, shape index: {}]
  %s10 = inlined_call_operand.hbm [shape: bf16[128,128], index: 10, kind: input, shape index: {}]
  %s11 = inlined_call_operand.vmem [shape: f32[1,128], index: 11, kind: input, shape index: {}]
  %s12 = inlined_call_operand.hbm [shape: bf16[128,896], index: 12, kind: input, shape index: {}]
  %s13 = inlined_call_operand.vmem [shape: f32[1,896], index: 13, kind: input, shape index: {}]
  %s14 = inlined_call_operand.vmem [shape: bf16[16,896], index: 14, kind: output, shape index: {0}]
  %s15 = inlined_call_operand.vmem [shape: f32[16,256], index: 15, kind: output, shape index: {1}]
  %16 = xla_tuple %s14, %s15
  %s17 = sld [smem:[#allocation0]]
  $region90: #{_lambda_.1} parent=0
    _
  %s19 = ssub.s32 1, %s17
  %s20 = scalar_select 0, %s19, %s17
  $region1: #{_lambda_.1} parent=0
    #allocation2 [shape = 'u8[32768]{0}', space=vmem, size = 0x8000, scoped, tag = 'input window, operand 4, single buffered']
    #allocation3 [shape = 's32[1]{0}', space=sflag, size = 0x4, scoped, tag = 'scoped memory for _lambda_.1']
    #allocation4 [shape = 'u8[32768]{0}', space=vmem, size = 0x8000, scoped, tag = 'input window, operand 8, single buffered']
    #allocation5 [shape = 's32[1]{0}', space=sflag, size = 0x4, scoped, tag = 'scoped memory for _lambda_.1']
    #allocation6 [shape = 'u8[32768]{0}', space=vmem, size = 0x8000, scoped, tag = 'input window, operand 10, single buffered']
    #allocation7 [shape = 'u8[229376]{0}', space=vmem, size = 0x38000, scoped, tag = 'input window, operand 12, single buffered']
    #allocation8 [shape = 's32[1]{0}', space=sflag, size = 0x4, scoped, tag = 'scoped memory for _lambda_.1']
    %21 = vsyncpa [#allocation3], 0
    %22 = vsyncpa [#allocation5], 0
    %23 = vsyncpa [#allocation8], 0
    // Predicated region
    $region2: #{_lambda_.1} parent=1 // pred_check
      _
    $region3: #{_lambda_.1} parent=1 // pred_check_branch
      %25 = sbr.rel (0) target = $region5
    $region4: #{_lambda_.1} parent=1 // pred_region
      _
    $region5: #{_lambda_.1} parent=1 // pred_fallthru
      _
    // Predicated region
    $region6: #{_lambda_.1} parent=1 // pred_check
      _
    $region7: #{_lambda_.1} parent=1 // pred_check_branch
      %27 = sbr.rel (0) target = $region9
    $region8: #{_lambda_.1} parent=1 // pred_region
      _
    $region9: #{_lambda_.1} parent=1 // pred_fallthru
      _
    // Predicated region
    $region10: #{_lambda_.1} parent=1 // pred_check
      _
    $region11: #{_lambda_.1} parent=1 // pred_check_branch
      %29 = sbr.rel (0) target = $region13
    $region12: #{_lambda_.1} parent=1 // pred_region
      _
    $region13: #{_lambda_.1} parent=1 // pred_fallthru
      _
    // Predicated region
    $region14: #{_lambda_.1} parent=1 // pred_check
      _
    $region15: #{_lambda_.1} parent=1 // pred_check_branch
      %31 = sbr.rel (0) target = $region17
    $region16: #{_lambda_.1} parent=1 // pred_region
      _
    $region17: #{_lambda_.1} parent=1 // pred_fallthru
      _
    // Predicated region
    $region18: #{_lambda_.1} parent=1 // pred_check
      _
    $region19: #{_lambda_.1} parent=1 // pred_check_branch
      %33 = sbr.rel (0) target = $region21
    $region20: #{_lambda_.1} parent=1 // pred_region
      %35 = vsyncadd [#allocation3], 0
      %s36 = sshll.u32 %s4, 4
      %s37 = int_to_ptr.hbm [resolvable:$true] %s36
      %s38 = sshll.u32 [#allocation2], 4
      %s39 = int_to_ptr.vmem [resolvable:$true] %s38
      %44 = dma.hbm_to_vmem [thread:$0]  %s37, 1024, %s39, [#allocation3], 64, 64, 4
    $region21: #{_lambda_.1} parent=1 // pred_fallthru
      _
    // Predicated region
    $region22: #{_lambda_.1} parent=1 // pred_check
      _
    $region23: #{_lambda_.1} parent=1 // pred_check_branch
      %46 = sbr.rel (0) target = $region25
    $region24: #{_lambda_.1} parent=1 // pred_region
      _
    $region25: #{_lambda_.1} parent=1 // pred_fallthru
      _
    // Predicated region
    $region26: #{_lambda_.1} parent=1 // pred_check
      _
    $region27: #{_lambda_.1} parent=1 // pred_check_branch
      %48 = sbr.rel (0) target = $region29
    $region28: #{_lambda_.1} parent=1 // pred_region
      _
    $region29: #{_lambda_.1} parent=1 // pred_fallthru
      _
    // Predicated region
    $region30: #{_lambda_.1} parent=1 // pred_check
      _
    $region31: #{_lambda_.1} parent=1 // pred_check_branch
      %50 = sbr.rel (0) target = $region33
    $region32: #{_lambda_.1} parent=1 // pred_region
      _
    $region33: #{_lambda_.1} parent=1 // pred_fallthru
      _
    // Predicated region
    $region34: #{_lambda_.1} parent=1 // pred_check
      _
    $region35: #{_lambda_.1} parent=1 // pred_check_branch
      %52 = sbr.rel (0) target = $region37
    $region36: #{_lambda_.1} parent=1 // pred_region
      %54 = vsyncadd [#allocation5], 0
      %s55 = sshll.u32 %s8, 4
      %s56 = int_to_ptr.hbm [resolvable:$true] %s55
      %s57 = sshll.u32 [#allocation4], 4
      %s58 = int_to_ptr.vmem [resolvable:$true] %s57
      %63 = dma.hbm_to_vmem [thread:$0]  %s56, 1024, %s58, [#allocation5], 64, 64, 4
    $region37: #{_lambda_.1} parent=1 // pred_fallthru
      _
    // Predicated region
    $region38: #{_lambda_.1} parent=1 // pred_check
      _
    $region39: #{_lambda_.1} parent=1 // pred_check_branch
      %65 = sbr.rel (0) target = $region41
    $region40: #{_lambda_.1} parent=1 // pred_region
      _
    $region41: #{_lambda_.1} parent=1 // pred_fallthru
      _
    // Predicated region
    $region42: #{_lambda_.1} parent=1 // pred_check
      _
    $region43: #{_lambda_.1} parent=1 // pred_check_branch
      %67 = sbr.rel (0) target = $region45
    $region44: #{_lambda_.1} parent=1 // pred_region
      %69 = vsyncadd [#allocation5], 0
      %s70 = sshll.u32 %s10, 4
      %s71 = int_to_ptr.hbm [resolvable:$true] %s70
      %s72 = sshll.u32 [#allocation6], 4
      %s73 = int_to_ptr.vmem [resolvable:$true] %s72
      %78 = dma.hbm_to_vmem [thread:$0]  %s71, 1024, %s73, [#allocation5], 64, 64, 4
    $region45: #{_lambda_.1} parent=1 // pred_fallthru
      _
    // Predicated region
    $region46: #{_lambda_.1} parent=1 // pred_check
      _
    $region47: #{_lambda_.1} parent=1 // pred_check_branch
      %80 = sbr.rel (0) target = $region49
    $region48: #{_lambda_.1} parent=1 // pred_region
      _
    $region49: #{_lambda_.1} parent=1 // pred_fallthru
      _
    // Predicated region
    $region50: #{_lambda_.1} parent=1 // pred_check
      _
    $region51: #{_lambda_.1} parent=1 // pred_check_branch
      %82 = sbr.rel (0) target = $region53
    $region52: #{_lambda_.1} parent=1 // pred_region
      %84 = vsyncadd [#allocation8], 0
      %s85 = sshll.u32 %s12, 4
      %s86 = int_to_ptr.hbm [resolvable:$true] %s85
      %s87 = sshll.u32 [#allocation7], 4
      %s88 = int_to_ptr.vmem [resolvable:$true] %s87
      %93 = dma.hbm_to_vmem [thread:$0]  %s86, 7168, %s88, [#allocation8], 448, 448, 28
    $region53: #{_lambda_.1} parent=1 // pred_fallthru
      _
    // Predicated region
    $region54: #{_lambda_.1} parent=1 // pred_check
      _
    $region55: #{_lambda_.1} parent=1 // pred_check_branch
      %95 = sbr.rel (0) target = $region57
    $region56: #{_lambda_.1} parent=1 // pred_region
      _
    $region57: #{_lambda_.1} parent=1 // pred_fallthru
      _
    // Predicated region
    $region58: #{_lambda_.1} parent=1 // pred_check
      _
    $region59: #{_lambda_.1} parent=1 // pred_check_branch
      %97 = sbr.rel (0) target = $region61
    $region60: #{_lambda_.1} parent=1 // pred_region
      %99 = dma.done [#allocation3], 1024
    $region61: #{_lambda_.1} parent=1 // pred_fallthru
      _
    // Predicated region
    $region62: #{_lambda_.1} parent=1 // pred_check
      _
    $region63: #{_lambda_.1} parent=1 // pred_check_branch
      %101 = sbr.rel (0) target = $region65
    $region64: #{_lambda_.1} parent=1 // pred_region
      %103 = dma.done [#allocation5], 1024
    $region65: #{_lambda_.1} parent=1 // pred_fallthru
      _
    // Predicated region
    $region66: #{_lambda_.1} parent=1 // pred_check
      _
    $region67: #{_lambda_.1} parent=1 // pred_check_branch
      %105 = sbr.rel (0) target = $region69
    $region68: #{_lambda_.1} parent=1 // pred_region
      %107 = dma.done [#allocation5], 1024
    $region69: #{_lambda_.1} parent=1 // pred_fallthru
      _
    // Predicated region
    $region70: #{_lambda_.1} parent=1 // pred_check
      _
    $region71: #{_lambda_.1} parent=1 // pred_check_branch
      %109 = sbr.rel (0) target = $region73
    $region72: #{_lambda_.1} parent=1 // pred_region
      %111 = dma.done [#allocation8], 7168
    $region73: #{_lambda_.1} parent=1 // pred_fallthru
      _
    %v112 = vld [vmem:[%s0] sm:$0xff]
    %v113 = vld [vmem:[%s0 + $0x8] sm:$0xff]
    %v114 = vld [vmem:[%s0 + $0x10] sm:$0xff]
    %v115 = vld [vmem:[%s0 + $0x18] sm:$0xf]
    %v116 = vld [vmem:[%s0 + $0x1c] sm:$0xff]
    %v117 = vld [vmem:[%s0 + $0x24] sm:$0xff]
    %v118 = vld [vmem:[%s0 + $0x2c] sm:$0xff]
    %v119 = vld [vmem:[%s0 + $0x34] sm:$0xf]
    %v120 = vld [vmem:[%s2] sm:$0xf]
    %v121 = vld [vmem:[%s2 + $0x4] sm:$0xf]
    %v122 = vld [vmem:[%s2 + $0x8] sm:$0xf]
    %v123 = vld [vmem:[%s2 + $0xc] sm:$0xf]
    %v124 = vld [vmem:[%s2 + $0x10] sm:$0xf]
    %v125 = vld [vmem:[%s2 + $0x14] sm:$0xf]
    %v126 = vld [vmem:[%s2 + $0x18] sm:$0xf]
    %v127 = vld [vmem:[%s2 + $0x1c] sm:$0xf]
    %v128 = vld [vmem:[%s2 + $0x20] sm:$0xf]
    %v129 = vld [vmem:[%s2 + $0x24] sm:$0xf]
    %v130 = vld [vmem:[%s2 + $0x28] sm:$0xf]
    %v131 = vld [vmem:[%s2 + $0x2c] sm:$0xf]
    %v132 = vld [vmem:[%s2 + $0x30] sm:$0xf]
    %v133 = vld [vmem:[%s2 + $0x34] sm:$0xf]
    %v134 = vld [vmem:[%s2 + $0x38] sm:$0xf]
    %v135 = vld [vmem:[%s2 + $0x3c] sm:$0xf]
    %v136 = vld [vmem:[%s2 + $0x40] sm:$0xf]
    %v137 = vld [vmem:[%s2 + $0x44] sm:$0xf]
    %v138 = vld [vmem:[%s2 + $0x48] sm:$0xf]
    %v139 = vld [vmem:[%s2 + $0x4c] sm:$0xf]
    %v140 = vld [vmem:[%s2 + $0x50] sm:$0xf]
    %v141 = vld [vmem:[%s2 + $0x54] sm:$0xf]
    %v142 = vld [vmem:[%s2 + $0x58] sm:$0xf]
    %v143 = vld [vmem:[%s2 + $0x5c] sm:$0xf]
    %v144 = vld [vmem:[%s2 + $0x60] sm:$0xf]
    %v145 = vld [vmem:[%s2 + $0x64] sm:$0xf]
    %v146 = vld [vmem:[%s2 + $0x68] sm:$0xf]
    %v147 = vld [vmem:[%s2 + $0x6c] sm:$0xf]
    %v148 = vld [vmem:[%s2 + $0x70] sm:$0xf]
    %v149 = vld [vmem:[%s2 + $0x74] sm:$0xf]
    %v150 = vld [vmem:[%s2 + $0x78] sm:$0xf]
    %v151 = vld [vmem:[%s2 + $0x7c] sm:$0xf]
    %v152 = vld [vmem:[%s2 + $0x80] sm:$0xf]
    %v153 = vld [vmem:[%s2 + $0x84] sm:$0xf]
    %v154 = vld [vmem:[%s2 + $0x88] sm:$0xf]
    %v155 = vld [vmem:[%s2 + $0x8c] sm:$0xf]
    %v156 = vld [vmem:[%s2 + $0x90] sm:$0xf]
    %v157 = vld [vmem:[%s2 + $0x94] sm:$0xf]
    %v158 = vld [vmem:[%s2 + $0x98] sm:$0xf]
    %v159 = vld [vmem:[%s2 + $0x9c] sm:$0xf]
    %v160 = vld [vmem:[%s2 + $0xa0] sm:$0xf]
    %v161 = vld [vmem:[%s2 + $0xa4] sm:$0xf]
    %v162 = vld [vmem:[%s2 + $0xa8] sm:$0xf]
    %v163 = vld [vmem:[%s2 + $0xac] sm:$0xf]
    %v164 = vld [vmem:[%s2 + $0xb0] sm:$0xf]
    %v165 = vld [vmem:[%s2 + $0xb4] sm:$0xf]
    %v166 = vld [vmem:[%s2 + $0xb8] sm:$0xf]
    %v167 = vld [vmem:[%s2 + $0xbc] sm:$0xf]
    %v168 = vld [vmem:[%s2 + $0xc0] sm:$0xf]
    %v169 = vld [vmem:[%s2 + $0xc4] sm:$0xf]
    %v170 = vld [vmem:[%s2 + $0xc8] sm:$0xf]
    %v171 = vld [vmem:[%s2 + $0xcc] sm:$0xf]
    %v172 = vld [vmem:[%s2 + $0xd0] sm:$0xf]
    %v173 = vld [vmem:[%s2 + $0xd4] sm:$0xf]
    %v174 = vld [vmem:[%s2 + $0xd8] sm:$0xf]
    %v175 = vld [vmem:[%s2 + $0xdc] sm:$0xf]
    %v176 = vld [vmem:[%s2 + $0xe0] sm:$0xf]
    %v177 = vld [vmem:[%s2 + $0xe4] sm:$0xf]
    %v178 = vld [vmem:[%s2 + $0xe8] sm:$0xf]
    %v179 = vld [vmem:[%s2 + $0xec] sm:$0xf]
    %v180 = vld [vmem:[%s2 + $0xf0] sm:$0xf]
    %v181 = vld [vmem:[%s2 + $0xf4] sm:$0xf]
    %v182 = vld [vmem:[%s2 + $0xf8] sm:$0xf]
    %v183 = vld [vmem:[%s2 + $0xfc] sm:$0xf]
    %v184 = vld [vmem:[%s2 + $0x100] sm:$0xf]
    %v185 = vld [vmem:[%s2 + $0x104] sm:$0xf]
    %v186 = vld [vmem:[%s2 + $0x108] sm:$0xf]
    %v187 = vld [vmem:[%s2 + $0x10c] sm:$0xf]
    %v188 = vld [vmem:[%s2 + $0x110] sm:$0xf]
    %v189 = vld [vmem:[%s2 + $0x114] sm:$0xf]
    %v190 = vld [vmem:[%s2 + $0x118] sm:$0xf]
    %v191 = vld [vmem:[%s2 + $0x11c] sm:$0xf]
    %v192 = vld [vmem:[%s2 + $0x120] sm:$0xf]
    %v193 = vld [vmem:[%s2 + $0x124] sm:$0xf]
    %v194 = vld [vmem:[%s2 + $0x128] sm:$0xf]
    %v195 = vld [vmem:[%s2 + $0x12c] sm:$0xf]
    %v196 = vld [vmem:[%s2 + $0x130] sm:$0xf]
    %v197 = vld [vmem:[%s2 + $0x134] sm:$0xf]
    %v198 = vld [vmem:[%s2 + $0x138] sm:$0xf]
    %v199 = vld [vmem:[%s2 + $0x13c] sm:$0xf]
    %v200 = vld [vmem:[%s2 + $0x140] sm:$0xf]
    %v201 = vld [vmem:[%s2 + $0x144] sm:$0xf]
    %v202 = vld [vmem:[%s2 + $0x148] sm:$0xf]
    %v203 = vld [vmem:[%s2 + $0x14c] sm:$0xf]
    %v204 = vld [vmem:[%s2 + $0x150] sm:$0xf]
    %v205 = vld [vmem:[%s2 + $0x154] sm:$0xf]
    %v206 = vld [vmem:[%s2 + $0x158] sm:$0xf]
    %v207 = vld [vmem:[%s2 + $0x15c] sm:$0xf]
    %v208 = vld [vmem:[%s2 + $0x160] sm:$0xf]
    %v209 = vld [vmem:[%s2 + $0x164] sm:$0xf]
    %v210 = vld [vmem:[%s2 + $0x168] sm:$0xf]
    %v211 = vld [vmem:[%s2 + $0x16c] sm:$0xf]
    %v212 = vld [vmem:[%s2 + $0x170] sm:$0xf]
    %v213 = vld [vmem:[%s2 + $0x174] sm:$0xf]
    %v214 = vld [vmem:[%s2 + $0x178] sm:$0xf]
    %v215 = vld [vmem:[%s2 + $0x17c] sm:$0xf]
    %v216 = vld [vmem:[%s2 + $0x180] sm:$0xf]
    %v217 = vld [vmem:[%s2 + $0x184] sm:$0xf]
    %v218 = vld [vmem:[%s2 + $0x188] sm:$0xf]
    %v219 = vld [vmem:[%s2 + $0x18c] sm:$0xf]
    %v220 = vld [vmem:[%s2 + $0x190] sm:$0xf]
    %v221 = vld [vmem:[%s2 + $0x194] sm:$0xf]
    %v222 = vld [vmem:[%s2 + $0x198] sm:$0xf]
    %v223 = vld [vmem:[%s2 + $0x19c] sm:$0xf]
    %v224 = vld [vmem:[%s2 + $0x1a0] sm:$0xf]
    %v225 = vld [vmem:[%s2 + $0x1a4] sm:$0xf]
    %v226 = vld [vmem:[%s2 + $0x1a8] sm:$0xf]
    %v227 = vld [vmem:[%s2 + $0x1ac] sm:$0xf]
    %v228 = vld [vmem:[%s2 + $0x1b0] sm:$0xf]
    %v229 = vld [vmem:[%s2 + $0x1b4] sm:$0xf]
    %v230 = vld [vmem:[%s2 + $0x1b8] sm:$0xf]
    %v231 = vld [vmem:[%s2 + $0x1bc] sm:$0xf]
    %v232 = vld [vmem:[%s3] sm:$0x1]
    %v234 = vperm.slane %v232, 0
    %v244 = vunpack.c.l.b16 %v112
    %v245 = vunpack.c.h.b16 %v112
    %v246 = vunpack.c.l.b16 %v113
    %v247 = vunpack.c.h.b16 %v113
    %v248 = vunpack.c.l.b16 %v114
    %v249 = vunpack.c.h.b16 %v114
    %v250 = vunpack.c.l.b16 %v115
    %v251 = vunpack.c.l.b16 %v116
    %v252 = vunpack.c.h.b16 %v116
    %v253 = vunpack.c.l.b16 %v117
    %v254 = vunpack.c.h.b16 %v117
    %v255 = vunpack.c.l.b16 %v118
    %v256 = vunpack.c.h.b16 %v118
    %v257 = vunpack.c.l.b16 %v119
    %v258 = vpack.c.b16 %v251, %v244
    %v259 = vpack.c.b16 %v252, %v245
    %v260 = vpack.c.b16 %v253, %v246
    %v261 = vpack.c.b16 %v254, %v247
    %v262 = vpack.c.b16 %v255, %v248
    %v263 = vpack.c.b16 %v256, %v249
    %v264 = vpack.c.b16 %v257, %v250
    %v384 = vunpack.c.l.b16 %v120
    %v385 = vunpack.c.l.b16 %v121
    %v386 = vunpack.c.l.b16 %v122
    %v387 = vunpack.c.l.b16 %v123
    %v388 = vunpack.c.l.b16 %v124
    %v389 = vunpack.c.l.b16 %v125
    %v390 = vunpack.c.l.b16 %v126
    %v391 = vunpack.c.l.b16 %v127
    %v392 = vunpack.c.l.b16 %v128
    %v393 = vunpack.c.l.b16 %v129
    %v394 = vunpack.c.l.b16 %v130
    %v395 = vunpack.c.l.b16 %v131
    %v396 = vunpack.c.l.b16 %v132
    %v397 = vunpack.c.l.b16 %v133
    %v398 = vunpack.c.l.b16 %v134
    %v399 = vunpack.c.l.b16 %v135
    %v400 = vunpack.c.l.b16 %v136
    %v401 = vunpack.c.l.b16 %v137
    %v402 = vunpack.c.l.b16 %v138
    %v403 = vunpack.c.l.b16 %v139
    %v404 = vunpack.c.l.b16 %v140
    %v405 = vunpack.c.l.b16 %v141
    %v406 = vunpack.c.l.b16 %v142
    %v407 = vunpack.c.l.b16 %v143
    %v408 = vunpack.c.l.b16 %v144
    %v409 = vunpack.c.l.b16 %v145
    %v410 = vunpack.c.l.b16 %v146
    %v411 = vunpack.c.l.b16 %v147
    %v412 = vunpack.c.l.b16 %v148
    %v413 = vunpack.c.l.b16 %v149
    %v414 = vunpack.c.l.b16 %v150
    %v415 = vunpack.c.l.b16 %v151
    %v416 = vunpack.c.l.b16 %v152
    %v417 = vunpack.c.l.b16 %v153
    %v418 = vunpack.c.l.b16 %v154
    %v419 = vunpack.c.l.b16 %v155
    %v420 = vunpack.c.l.b16 %v156
    %v421 = vunpack.c.l.b16 %v157
    %v422 = vunpack.c.l.b16 %v158
    %v423 = vunpack.c.l.b16 %v159
    %v424 = vunpack.c.l.b16 %v160
    %v425 = vunpack.c.l.b16 %v161
    %v426 = vunpack.c.l.b16 %v162
    %v427 = vunpack.c.l.b16 %v163
    %v428 = vunpack.c.l.b16 %v164
    %v429 = vunpack.c.l.b16 %v165
    %v430 = vunpack.c.l.b16 %v166
    %v431 = vunpack.c.l.b16 %v167
    %v432 = vunpack.c.l.b16 %v168
    %v433 = vunpack.c.l.b16 %v169
    %v434 = vunpack.c.l.b16 %v170
    %v435 = vunpack.c.l.b16 %v171
    %v436 = vunpack.c.l.b16 %v172
    %v437 = vunpack.c.l.b16 %v173
    %v438 = vunpack.c.l.b16 %v174
    %v439 = vunpack.c.l.b16 %v175
    %v440 = vunpack.c.l.b16 %v176
    %v441 = vunpack.c.l.b16 %v177
    %v442 = vunpack.c.l.b16 %v178
    %v443 = vunpack.c.l.b16 %v179
    %v444 = vunpack.c.l.b16 %v180
    %v445 = vunpack.c.l.b16 %v181
    %v446 = vunpack.c.l.b16 %v182
    %v447 = vunpack.c.l.b16 %v183
    %v448 = vunpack.c.l.b16 %v184
    %v449 = vunpack.c.l.b16 %v185
    %v450 = vunpack.c.l.b16 %v186
    %v451 = vunpack.c.l.b16 %v187
    %v452 = vunpack.c.l.b16 %v188
    %v453 = vunpack.c.l.b16 %v189
    %v454 = vunpack.c.l.b16 %v190
    %v455 = vunpack.c.l.b16 %v191
    %v456 = vunpack.c.l.b16 %v192
    %v457 = vunpack.c.l.b16 %v193
    %v458 = vunpack.c.l.b16 %v194
    %v459 = vunpack.c.l.b16 %v195
    %v460 = vunpack.c.l.b16 %v196
    %v461 = vunpack.c.l.b16 %v197
    %v462 = vunpack.c.l.b16 %v198
    %v463 = vunpack.c.l.b16 %v199
    %v464 = vunpack.c.l.b16 %v200
    %v465 = vunpack.c.l.b16 %v201
    %v466 = vunpack.c.l.b16 %v202
    %v467 = vunpack.c.l.b16 %v203
    %v468 = vunpack.c.l.b16 %v204
    %v469 = vunpack.c.l.b16 %v205
    %v470 = vunpack.c.l.b16 %v206
    %v471 = vunpack.c.l.b16 %v207
    %v472 = vunpack.c.l.b16 %v208
    %v473 = vunpack.c.l.b16 %v209
    %v474 = vunpack.c.l.b16 %v210
    %v475 = vunpack.c.l.b16 %v211
    %v476 = vunpack.c.l.b16 %v212
    %v477 = vunpack.c.l.b16 %v213
    %v478 = vunpack.c.l.b16 %v214
    %v479 = vunpack.c.l.b16 %v215
    %v480 = vunpack.c.l.b16 %v216
    %v481 = vunpack.c.l.b16 %v217
    %v482 = vunpack.c.l.b16 %v218
    %v483 = vunpack.c.l.b16 %v219
    %v484 = vunpack.c.l.b16 %v220
    %v485 = vunpack.c.l.b16 %v221
    %v486 = vunpack.c.l.b16 %v222
    %v487 = vunpack.c.l.b16 %v223
    %v488 = vunpack.c.l.b16 %v224
    %v489 = vunpack.c.l.b16 %v225
    %v490 = vunpack.c.l.b16 %v226
    %v491 = vunpack.c.l.b16 %v227
    %v492 = vunpack.c.l.b16 %v228
    %v493 = vunpack.c.l.b16 %v229
    %v494 = vunpack.c.l.b16 %v230
    %v495 = vunpack.c.l.b16 %v231
    %v496 = vpack.c.b16 %v385, %v384
    %v497 = vpack.c.b16 %v387, %v386
    %v498 = vpack.c.b16 %v389, %v388
    %v499 = vpack.c.b16 %v391, %v390
    %v500 = vpack.c.b16 %v393, %v392
    %v501 = vpack.c.b16 %v395, %v394
    %v502 = vpack.c.b16 %v397, %v396
    %v503 = vpack.c.b16 %v399, %v398
    %v504 = vpack.c.b16 %v401, %v400
    %v505 = vpack.c.b16 %v403, %v402
    %v506 = vpack.c.b16 %v405, %v404
    %v507 = vpack.c.b16 %v407, %v406
    %v508 = vpack.c.b16 %v409, %v408
    %v509 = vpack.c.b16 %v411, %v410
    %v510 = vpack.c.b16 %v413, %v412
    %v511 = vpack.c.b16 %v415, %v414
    %v512 = vpack.c.b16 %v417, %v416
    %v513 = vpack.c.b16 %v419, %v418
    %v514 = vpack.c.b16 %v421, %v420
    %v515 = vpack.c.b16 %v423, %v422
    %v516 = vpack.c.b16 %v425, %v424
    %v517 = vpack.c.b16 %v427, %v426
    %v518 = vpack.c.b16 %v429, %v428
    %v519 = vpack.c.b16 %v431, %v430
    %v520 = vpack.c.b16 %v433, %v432
    %v521 = vpack.c.b16 %v435, %v434
    %v522 = vpack.c.b16 %v437, %v436
    %v523 = vpack.c.b16 %v439, %v438
    %v524 = vpack.c.b16 %v441, %v440
    %v525 = vpack.c.b16 %v443, %v442
    %v526 = vpack.c.b16 %v445, %v444
    %v527 = vpack.c.b16 %v447, %v446
    %v528 = vpack.c.b16 %v449, %v448
    %v529 = vpack.c.b16 %v451, %v450
    %v530 = vpack.c.b16 %v453, %v452
    %v531 = vpack.c.b16 %v455, %v454
    %v532 = vpack.c.b16 %v457, %v456
    %v533 = vpack.c.b16 %v459, %v458
    %v534 = vpack.c.b16 %v461, %v460
    %v535 = vpack.c.b16 %v463, %v462
    %v536 = vpack.c.b16 %v465, %v464
    %v537 = vpack.c.b16 %v467, %v466
    %v538 = vpack.c.b16 %v469, %v468
    %v539 = vpack.c.b16 %v471, %v470
    %v540 = vpack.c.b16 %v473, %v472
    %v541 = vpack.c.b16 %v475, %v474
    %v542 = vpack.c.b16 %v477, %v476
    %v543 = vpack.c.b16 %v479, %v478
    %v544 = vpack.c.b16 %v481, %v480
    %v545 = vpack.c.b16 %v483, %v482
    %v546 = vpack.c.b16 %v485, %v484
    %v547 = vpack.c.b16 %v487, %v486
    %v548 = vpack.c.b16 %v489, %v488
    %v549 = vpack.c.b16 %v491, %v490
    %v550 = vpack.c.b16 %v493, %v492
    %v551 = vpack.c.b16 %v495, %v494
    %608 = vmatpush.bf16.msra.mxu0 %v503
    %609 = vmatpush.bf16.msra.mxu0 %v502
    %610 = vmatpush.bf16.msra.mxu0 %v501
    %611 = vmatpush.bf16.msra.mxu0 %v500
    %612 = vmatpush.bf16.msra.mxu0 %v499
    %613 = vmatpush.bf16.msra.mxu0 %v498
    %614 = vmatpush.bf16.msra.mxu0 %v497
    %615 = vmatpush.bf16.msra.mxu0 %v496
    %616 = vmatmul.bf16.gmra.mxu0 %v258
    %v617 = vpop.f32.mrf.mxu0
    %v618 = vadd.f32 %v234, %v617
    %v619 = vpop.f32.mrf.mxu0
    %v620 = vadd.f32 %v234, %v619
    %621 = vdwg.mxu0
    %622 = vmatpush.bf16.msra.mxu0 %v511
    %623 = vmatpush.bf16.msra.mxu0 %v510
    %624 = vmatpush.bf16.msra.mxu0 %v509
    %625 = vmatpush.bf16.msra.mxu0 %v508
    %626 = vmatpush.bf16.msra.mxu0 %v507
    %627 = vmatpush.bf16.msra.mxu0 %v506
    %628 = vmatpush.bf16.msra.mxu0 %v505
    %629 = vmatpush.bf16.msra.mxu0 %v504
    %630 = vmatmul.bf16.gmra.mxu0 %v259
    %v631 = vpop.f32.mrf.mxu0
    %v632 = vadd.f32 %v618, %v631
    %v633 = vpop.f32.mrf.mxu0
    %v634 = vadd.f32 %v620, %v633
    %635 = vdwg.mxu0
    %636 = vmatpush.bf16.msra.mxu0 %v519
    %637 = vmatpush.bf16.msra.mxu0 %v518
    %638 = vmatpush.bf16.msra.mxu0 %v517
    %639 = vmatpush.bf16.msra.mxu0 %v516
    %640 = vmatpush.bf16.msra.mxu0 %v515
    %641 = vmatpush.bf16.msra.mxu0 %v514
    %642 = vmatpush.bf16.msra.mxu0 %v513
    %643 = vmatpush.bf16.msra.mxu0 %v512
    %644 = vmatmul.bf16.gmra.mxu0 %v260
    %v645 = vpop.f32.mrf.mxu0
    %v646 = vadd.f32 %v632, %v645
    %v647 = vpop.f32.mrf.mxu0
    %v648 = vadd.f32 %v634, %v647
    %649 = vdwg.mxu0
    %650 = vmatpush.bf16.msra.mxu0 %v527
    %651 = vmatpush.bf16.msra.mxu0 %v526
    %652 = vmatpush.bf16.msra.mxu0 %v525
    %653 = vmatpush.bf16.msra.mxu0 %v524
    %654 = vmatpush.bf16.msra.mxu0 %v523
    %655 = vmatpush.bf16.msra.mxu0 %v522
    %656 = vmatpush.bf16.msra.mxu0 %v521
    %657 = vmatpush.bf16.msra.mxu0 %v520
    %658 = vmatmul.bf16.gmra.mxu0 %v261
    %v659 = vpop.f32.mrf.mxu0
    %v660 = vadd.f32 %v646, %v659
    %v661 = vpop.f32.mrf.mxu0
    %v662 = vadd.f32 %v648, %v661
    %663 = vdwg.mxu0
    %664 = vmatpush.bf16.msra.mxu0 %v535
    %665 = vmatpush.bf16.msra.mxu0 %v534
    %666 = vmatpush.bf16.msra.mxu0 %v533
    %667 = vmatpush.bf16.msra.mxu0 %v532
    %668 = vmatpush.bf16.msra.mxu0 %v531
    %669 = vmatpush.bf16.msra.mxu0 %v530
    %670 = vmatpush.bf16.msra.mxu0 %v529
    %671 = vmatpush.bf16.msra.mxu0 %v528
    %672 = vmatmul.bf16.gmra.mxu0 %v262
    %v673 = vpop.f32.mrf.mxu0
    %v674 = vadd.f32 %v660, %v673
    %v675 = vpop.f32.mrf.mxu0
    %v676 = vadd.f32 %v662, %v675
    %677 = vdwg.mxu0
    %678 = vmatpush.bf16.msra.mxu0 %v543
    %679 = vmatpush.bf16.msra.mxu0 %v542
    %680 = vmatpush.bf16.msra.mxu0 %v541
    %681 = vmatpush.bf16.msra.mxu0 %v540
    %682 = vmatpush.bf16.msra.mxu0 %v539
    %683 = vmatpush.bf16.msra.mxu0 %v538
    %684 = vmatpush.bf16.msra.mxu0 %v537
    %685 = vmatpush.bf16.msra.mxu0 %v536
    %686 = vmatmul.bf16.gmra.mxu0 %v263
    %v687 = vpop.f32.mrf.mxu0
    %v688 = vadd.f32 %v674, %v687
    %v689 = vpop.f32.mrf.mxu0
    %v690 = vadd.f32 %v676, %v689
    %691 = vdwg.mxu0
    %692 = vmatpush.bf16.msra.mxu0 %v551
    %693 = vmatpush.bf16.msra.mxu0 %v550
    %694 = vmatpush.bf16.msra.mxu0 %v549
    %695 = vmatpush.bf16.msra.mxu0 %v548
    %696 = vmatpush.bf16.msra.mxu0 %v547
    %697 = vmatpush.bf16.msra.mxu0 %v546
    %698 = vmatpush.bf16.msra.mxu0 %v545
    %699 = vmatpush.bf16.msra.mxu0 %v544
    %700 = vmatmul.bf16.gmra.mxu0 %v264
    %v701 = vpop.f32.mrf.mxu0
    %v702 = vadd.f32 %v688, %v701
    %v703 = vpop.f32.mrf.mxu0
    %v704 = vadd.f32 %v690, %v703
    %705 = vdwg.mxu0
    %v706 = vmax.f32 %v702, 0.0
    %v707 = vmax.f32 %v704, 0.0
    %v708 = vpack.c.bf16 %v707, %v706
    %v709 = vld [vmem:[#allocation2] sm:$0xf]
    %v710 = vld [vmem:[#allocation2 + $0x4] sm:$0xf]
    %v711 = vld [vmem:[#allocation2 + $0x8] sm:$0xf]
    %v712 = vld [vmem:[#allocation2 + $0xc] sm:$0xf]
    %v713 = vld [vmem:[#allocation2 + $0x10] sm:$0xf]
    %v714 = vld [vmem:[#allocation2 + $0x14] sm:$0xf]
    %v715 = vld [vmem:[#allocation2 + $0x18] sm:$0xf]
    %v716 = vld [vmem:[#allocation2 + $0x1c] sm:$0xf]
    %v717 = vld [vmem:[#allocation2 + $0x20] sm:$0xf]
    %v718 = vld [vmem:[#allocation2 + $0x24] sm:$0xf]
    %v719 = vld [vmem:[#allocation2 + $0x28] sm:$0xf]
    %v720 = vld [vmem:[#allocation2 + $0x2c] sm:$0xf]
    %v721 = vld [vmem:[#allocation2 + $0x30] sm:$0xf]
    %v722 = vld [vmem:[#allocation2 + $0x34] sm:$0xf]
    %v723 = vld [vmem:[#allocation2 + $0x38] sm:$0xf]
    %v724 = vld [vmem:[#allocation2 + $0x3c] sm:$0xf]
    %v725 = vld [vmem:[%s5] sm:$0x1]
    %v727 = vperm.slane %v725, 0
    %v745 = vunpack.c.l.b16 %v709
    %v746 = vunpack.c.l.b16 %v710
    %v747 = vunpack.c.l.b16 %v711
    %v748 = vunpack.c.l.b16 %v712
    %v749 = vunpack.c.l.b16 %v713
    %v750 = vunpack.c.l.b16 %v714
    %v751 = vunpack.c.l.b16 %v715
    %v752 = vunpack.c.l.b16 %v716
    %v753 = vunpack.c.l.b16 %v717
    %v754 = vunpack.c.l.b16 %v718
    %v755 = vunpack.c.l.b16 %v719
    %v756 = vunpack.c.l.b16 %v720
    %v757 = vunpack.c.l.b16 %v721
    %v758 = vunpack.c.l.b16 %v722
    %v759 = vunpack.c.l.b16 %v723
    %v760 = vunpack.c.l.b16 %v724
    %v761 = vpack.c.b16 %v746, %v745
    %v762 = vpack.c.b16 %v748, %v747
    %v763 = vpack.c.b16 %v750, %v749
    %v764 = vpack.c.b16 %v752, %v751
    %v765 = vpack.c.b16 %v754, %v753
    %v766 = vpack.c.b16 %v756, %v755
    %v767 = vpack.c.b16 %v758, %v757
    %v768 = vpack.c.b16 %v760, %v759
    %777 = vmatpush.bf16.msra.mxu0 %v768
    %778 = vmatpush.bf16.msra.mxu0 %v767
    %779 = vmatpush.bf16.msra.mxu0 %v766
    %780 = vmatpush.bf16.msra.mxu0 %v765
    %781 = vmatpush.bf16.msra.mxu0 %v764
    %782 = vmatpush.bf16.msra.mxu0 %v763
    %783 = vmatpush.bf16.msra.mxu0 %v762
    %784 = vmatpush.bf16.msra.mxu0 %v761
    %785 = vmatmul.bf16.gmra.mxu0 %v708
    %v786 = vpop.f32.mrf.mxu0
    %v787 = vadd.f32 %v727, %v786
    %v788 = vpop.f32.mrf.mxu0
    %v789 = vadd.f32 %v727, %v788
    %790 = vdwg.mxu0
    %v791 = vmax.f32 %v787, 0.0
    %v792 = vmax.f32 %v789, 0.0
    %v793 = vpack.c.bf16 %v792, %v791
    %v794 = vld [vmem:[%s6] sm:$0xff]
    %v795 = vld [vmem:[%s6 + $0x8] sm:$0xff]
    %v796 = vld [vmem:[%s6 + $0x10] sm:$0xff]
    %v797 = vld [vmem:[%s6 + $0x18] sm:$0xff]
    %v798 = vld [vmem:[%s6 + $0x20] sm:$0xff]
    %v799 = vld [vmem:[%s6 + $0x28] sm:$0xff]
    %v800 = vld [vmem:[%s6 + $0x30] sm:$0xff]
    %v801 = vld [vmem:[%s6 + $0x38] sm:$0xff]
    %v802 = vld [vmem:[%s6 + $0x40] sm:$0xff]
    %v803 = vld [vmem:[%s6 + $0x48] sm:$0xff]
    %v804 = vld [vmem:[%s6 + $0x50] sm:$0xff]
    %v805 = vld [vmem:[%s6 + $0x58] sm:$0xff]
    %v806 = vld [vmem:[%s6 + $0x60] sm:$0xff]
    %v807 = vld [vmem:[%s6 + $0x68] sm:$0xff]
    %v808 = vld [vmem:[%s6 + $0x70] sm:$0xff]
    %v809 = vld [vmem:[%s6 + $0x78] sm:$0xff]
    %v810 = vld [vmem:[%s7] sm:$0x3]
    %v812 = vperm.slane %v810, 0
    %v813 = vperm.slane %v810, 1
    %v832 = vunpack.c.l.b16 %v794
    %v833 = vunpack.c.h.b16 %v794
    %v834 = vunpack.c.l.b16 %v795
    %v835 = vunpack.c.h.b16 %v795
    %v836 = vunpack.c.l.b16 %v796
    %v837 = vunpack.c.h.b16 %v796
    %v838 = vunpack.c.l.b16 %v797
    %v839 = vunpack.c.h.b16 %v797
    %v840 = vunpack.c.l.b16 %v798
    %v841 = vunpack.c.h.b16 %v798
    %v842 = vunpack.c.l.b16 %v799
    %v843 = vunpack.c.h.b16 %v799
    %v844 = vunpack.c.l.b16 %v800
    %v845 = vunpack.c.h.b16 %v800
    %v846 = vunpack.c.l.b16 %v801
    %v847 = vunpack.c.h.b16 %v801
    %v848 = vunpack.c.l.b16 %v802
    %v849 = vunpack.c.h.b16 %v802
    %v850 = vunpack.c.l.b16 %v803
    %v851 = vunpack.c.h.b16 %v803
    %v852 = vunpack.c.l.b16 %v804
    %v853 = vunpack.c.h.b16 %v804
    %v854 = vunpack.c.l.b16 %v805
    %v855 = vunpack.c.h.b16 %v805
    %v856 = vunpack.c.l.b16 %v806
    %v857 = vunpack.c.h.b16 %v806
    %v858 = vunpack.c.l.b16 %v807
    %v859 = vunpack.c.h.b16 %v807
    %v860 = vunpack.c.l.b16 %v808
    %v861 = vunpack.c.h.b16 %v808
    %v862 = vunpack.c.l.b16 %v809
    %v863 = vunpack.c.h.b16 %v809
    %v864 = vpack.c.b16 %v834, %v832
    %v865 = vpack.c.b16 %v835, %v833
    %v866 = vpack.c.b16 %v838, %v836
    %v867 = vpack.c.b16 %v839, %v837
    %v868 = vpack.c.b16 %v842, %v840
    %v869 = vpack.c.b16 %v843, %v841
    %v870 = vpack.c.b16 %v846, %v844
    %v871 = vpack.c.b16 %v847, %v845
    %v872 = vpack.c.b16 %v850, %v848
    %v873 = vpack.c.b16 %v851, %v849
    %v874 = vpack.c.b16 %v854, %v852
    %v875 = vpack.c.b16 %v855, %v853
    %v876 = vpack.c.b16 %v858, %v856
    %v877 = vpack.c.b16 %v859, %v857
    %v878 = vpack.c.b16 %v862, %v860
    %v879 = vpack.c.b16 %v863, %v861
    %896 = vmatpush.bf16.msra.mxu0 %v878
    %897 = vmatpush.bf16.msra.mxu0 %v876
    %898 = vmatpush.bf16.msra.mxu0 %v874
    %899 = vmatpush.bf16.msra.mxu0 %v872
    %900 = vmatpush.bf16.msra.mxu0 %v870
    %901 = vmatpush.bf16.msra.mxu0 %v868
    %902 = vmatpush.bf16.msra.mxu0 %v866
    %903 = vmatpush.bf16.msra.mxu0 %v864
    %904 = vmatmul.bf16.gmra.mxu0 %v793
    %v905 = vpop.f32.mrf.mxu0
    %v906 = vadd.f32 %v812, %v905
    %v907 = vpop.f32.mrf.mxu0
    %v908 = vadd.f32 %v812, %v907
    %909 = vdwg.mxu0
    %910 = vmatpush.bf16.msra.mxu0 %v879
    %911 = vmatpush.bf16.msra.mxu0 %v877
    %912 = vmatpush.bf16.msra.mxu0 %v875
    %913 = vmatpush.bf16.msra.mxu0 %v873
    %914 = vmatpush.bf16.msra.mxu0 %v871
    %915 = vmatpush.bf16.msra.mxu0 %v869
    %916 = vmatpush.bf16.msra.mxu0 %v867
    %917 = vmatpush.bf16.msra.mxu0 %v865
    %918 = vmatmul.bf16.gmra.mxu0 %v793
    %v919 = vpop.f32.mrf.mxu0
    %v920 = vadd.f32 %v813, %v919
    %v921 = vpop.f32.mrf.mxu0
    %v922 = vadd.f32 %v813, %v921
    %923 = vdwg.mxu0
    %v924 = vld [vmem:[%s1] sm:$0xff]
    %v925 = vld [vmem:[%s1 + $0x8] sm:$0xff]
    %v926 = vmul.f32 %v920, 0.5
    %v927 = vmul.f32 %v922, 0.5
    %v928 = vmul.f32 %v926, 1.442695
    %v929 = vpow.pop %v928
    %v930 = vmul.f32 %v927, 1.442695
    %v931 = vpow.pop %v930
    %v932 = vmul.f32 %v924, %v929
    %v933 = vmul.f32 %v925, %v931
    %v934 = vadd.f32 %v932, %v906
    %v935 = vadd.f32 %v933, %v908
    %v936 = vpack.c.bf16 %v935, %v934
    %v937 = vld [vmem:[#allocation4] sm:$0xf]
    %v938 = vld [vmem:[#allocation4 + $0x4] sm:$0xf]
    %v939 = vld [vmem:[#allocation4 + $0x8] sm:$0xf]
    %v940 = vld [vmem:[#allocation4 + $0xc] sm:$0xf]
    %v941 = vld [vmem:[#allocation4 + $0x10] sm:$0xf]
    %v942 = vld [vmem:[#allocation4 + $0x14] sm:$0xf]
    %v943 = vld [vmem:[#allocation4 + $0x18] sm:$0xf]
    %v944 = vld [vmem:[#allocation4 + $0x1c] sm:$0xf]
    %v945 = vld [vmem:[#allocation4 + $0x20] sm:$0xf]
    %v946 = vld [vmem:[#allocation4 + $0x24] sm:$0xf]
    %v947 = vld [vmem:[#allocation4 + $0x28] sm:$0xf]
    %v948 = vld [vmem:[#allocation4 + $0x2c] sm:$0xf]
    %v949 = vld [vmem:[#allocation4 + $0x30] sm:$0xf]
    %v950 = vld [vmem:[#allocation4 + $0x34] sm:$0xf]
    %v951 = vld [vmem:[#allocation4 + $0x38] sm:$0xf]
    %v952 = vld [vmem:[#allocation4 + $0x3c] sm:$0xf]
    %v953 = vld [vmem:[%s9] sm:$0x1]
    %v955 = vperm.slane %v953, 0
    %v973 = vunpack.c.l.b16 %v937
    %v974 = vunpack.c.l.b16 %v938
    %v975 = vunpack.c.l.b16 %v939
    %v976 = vunpack.c.l.b16 %v940
    %v977 = vunpack.c.l.b16 %v941
    %v978 = vunpack.c.l.b16 %v942
    %v979 = vunpack.c.l.b16 %v943
    %v980 = vunpack.c.l.b16 %v944
    %v981 = vunpack.c.l.b16 %v945
    %v982 = vunpack.c.l.b16 %v946
    %v983 = vunpack.c.l.b16 %v947
    %v984 = vunpack.c.l.b16 %v948
    %v985 = vunpack.c.l.b16 %v949
    %v986 = vunpack.c.l.b16 %v950
    %v987 = vunpack.c.l.b16 %v951
    %v988 = vunpack.c.l.b16 %v952
    %v989 = vpack.c.b16 %v974, %v973
    %v990 = vpack.c.b16 %v976, %v975
    %v991 = vpack.c.b16 %v978, %v977
    %v992 = vpack.c.b16 %v980, %v979
    %v993 = vpack.c.b16 %v982, %v981
    %v994 = vpack.c.b16 %v984, %v983
    %v995 = vpack.c.b16 %v986, %v985
    %v996 = vpack.c.b16 %v988, %v987
    %1005 = vmatpush.bf16.msra.mxu0 %v996
    %1006 = vmatpush.bf16.msra.mxu0 %v995
    %1007 = vmatpush.bf16.msra.mxu0 %v994
    %1008 = vmatpush.bf16.msra.mxu0 %v993
    %1009 = vmatpush.bf16.msra.mxu0 %v992
    %1010 = vmatpush.bf16.msra.mxu0 %v991
    %1011 = vmatpush.bf16.msra.mxu0 %v990
    %1012 = vmatpush.bf16.msra.mxu0 %v989
    %1013 = vmatmul.bf16.gmra.mxu0 %v936
    %v1014 = vpop.f32.mrf.mxu0
    %v1015 = vadd.f32 %v955, %v1014
    %v1016 = vpop.f32.mrf.mxu0
    %v1017 = vadd.f32 %v955, %v1016
    %1018 = vdwg.mxu0
    %v1019 = vmax.f32 %v1015, 0.0
    %v1020 = vmax.f32 %v1017, 0.0
    %v1021 = vpack.c.bf16 %v1020, %v1019
    %v1022 = vld [vmem:[#allocation6] sm:$0xf]
    %v1023 = vld [vmem:[#allocation6 + $0x4] sm:$0xf]
    %v1024 = vld [vmem:[#allocation6 + $0x8] sm:$0xf]
    %v1025 = vld [vmem:[#allocation6 + $0xc] sm:$0xf]
    %v1026 = vld [vmem:[#allocation6 + $0x10] sm:$0xf]
    %v1027 = vld [vmem:[#allocation6 + $0x14] sm:$0xf]
    %v1028 = vld [vmem:[#allocation6 + $0x18] sm:$0xf]
    %v1029 = vld [vmem:[#allocation6 + $0x1c] sm:$0xf]
    %v1030 = vld [vmem:[#allocation6 + $0x20] sm:$0xf]
    %v1031 = vld [vmem:[#allocation6 + $0x24] sm:$0xf]
    %v1032 = vld [vmem:[#allocation6 + $0x28] sm:$0xf]
    %v1033 = vld [vmem:[#allocation6 + $0x2c] sm:$0xf]
    %v1034 = vld [vmem:[#allocation6 + $0x30] sm:$0xf]
    %v1035 = vld [vmem:[#allocation6 + $0x34] sm:$0xf]
    %v1036 = vld [vmem:[#allocation6 + $0x38] sm:$0xf]
    %v1037 = vld [vmem:[#allocation6 + $0x3c] sm:$0xf]
    %v1038 = vld [vmem:[%s11] sm:$0x1]
    %v1040 = vperm.slane %v1038, 0
    %v1058 = vunpack.c.l.b16 %v1022
    %v1059 = vunpack.c.l.b16 %v1023
    %v1060 = vunpack.c.l.b16 %v1024
    %v1061 = vunpack.c.l.b16 %v1025
    %v1062 = vunpack.c.l.b16 %v1026
    %v1063 = vunpack.c.l.b16 %v1027
    %v1064 = vunpack.c.l.b16 %v1028
    %v1065 = vunpack.c.l.b16 %v1029
    %v1066 = vunpack.c.l.b16 %v1030
    %v1067 = vunpack.c.l.b16 %v1031
    %v1068 = vunpack.c.l.b16 %v1032
    %v1069 = vunpack.c.l.b16 %v1033
    %v1070 = vunpack.c.l.b16 %v1034
    %v1071 = vunpack.c.l.b16 %v1035
    %v1072 = vunpack.c.l.b16 %v1036
    %v1073 = vunpack.c.l.b16 %v1037
    %v1074 = vpack.c.b16 %v1059, %v1058
    %v1075 = vpack.c.b16 %v1061, %v1060
    %v1076 = vpack.c.b16 %v1063, %v1062
    %v1077 = vpack.c.b16 %v1065, %v1064
    %v1078 = vpack.c.b16 %v1067, %v1066
    %v1079 = vpack.c.b16 %v1069, %v1068
    %v1080 = vpack.c.b16 %v1071, %v1070
    %v1081 = vpack.c.b16 %v1073, %v1072
    %1090 = vmatpush.bf16.msra.mxu0 %v1081
    %1091 = vmatpush.bf16.msra.mxu0 %v1080
    %1092 = vmatpush.bf16.msra.mxu0 %v1079
    %1093 = vmatpush.bf16.msra.mxu0 %v1078
    %1094 = vmatpush.bf16.msra.mxu0 %v1077
    %1095 = vmatpush.bf16.msra.mxu0 %v1076
    %1096 = vmatpush.bf16.msra.mxu0 %v1075
    %1097 = vmatpush.bf16.msra.mxu0 %v1074
    %1098 = vmatmul.bf16.gmra.mxu0 %v1021
    %v1099 = vpop.f32.mrf.mxu0
    %v1100 = vadd.f32 %v1040, %v1099
    %v1101 = vpop.f32.mrf.mxu0
    %v1102 = vadd.f32 %v1040, %v1101
    %1103 = vdwg.mxu0
    %v1104 = vmax.f32 %v1100, 0.0
    %v1105 = vmax.f32 %v1102, 0.0
    %v1106 = vpack.c.bf16 %v1105, %v1104
    %v1107 = vld [vmem:[#allocation7] sm:$0xff]
    %v1108 = vld [vmem:[#allocation7 + $0x8] sm:$0xff]
    %v1109 = vld [vmem:[#allocation7 + $0x10] sm:$0xff]
    %v1110 = vld [vmem:[#allocation7 + $0x18] sm:$0xf]
    %v1111 = vld [vmem:[#allocation7 + $0x1c] sm:$0xff]
    %v1112 = vld [vmem:[#allocation7 + $0x24] sm:$0xff]
    %v1113 = vld [vmem:[#allocation7 + $0x2c] sm:$0xff]
    %v1114 = vld [vmem:[#allocation7 + $0x34] sm:$0xf]
    %v1115 = vld [vmem:[#allocation7 + $0x38] sm:$0xff]
    %v1116 = vld [vmem:[#allocation7 + $0x40] sm:$0xff]
    %v1117 = vld [vmem:[#allocation7 + $0x48] sm:$0xff]
    %v1118 = vld [vmem:[#allocation7 + $0x50] sm:$0xf]
    %v1119 = vld [vmem:[#allocation7 + $0x54] sm:$0xff]
    %v1120 = vld [vmem:[#allocation7 + $0x5c] sm:$0xff]
    %v1121 = vld [vmem:[#allocation7 + $0x64] sm:$0xff]
    %v1122 = vld [vmem:[#allocation7 + $0x6c] sm:$0xf]
    %v1123 = vld [vmem:[#allocation7 + $0x70] sm:$0xff]
    %v1124 = vld [vmem:[#allocation7 + $0x78] sm:$0xff]
    %v1125 = vld [vmem:[#allocation7 + $0x80] sm:$0xff]
    %v1126 = vld [vmem:[#allocation7 + $0x88] sm:$0xf]
    %v1127 = vld [vmem:[#allocation7 + $0x8c] sm:$0xff]
    %v1128 = vld [vmem:[#allocation7 + $0x94] sm:$0xff]
    %v1129 = vld [vmem:[#allocation7 + $0x9c] sm:$0xff]
    %v1130 = vld [vmem:[#allocation7 + $0xa4] sm:$0xf]
    %v1131 = vld [vmem:[#allocation7 + $0xa8] sm:$0xff]
    %v1132 = vld [vmem:[#allocation7 + $0xb0] sm:$0xff]
    %v1133 = vld [vmem:[#allocation7 + $0xb8] sm:$0xff]
    %v1134 = vld [vmem:[#allocation7 + $0xc0] sm:$0xf]
    %v1135 = vld [vmem:[#allocation7 + $0xc4] sm:$0xff]
    %v1136 = vld [vmem:[#allocation7 + $0xcc] sm:$0xff]
    %v1137 = vld [vmem:[#allocation7 + $0xd4] sm:$0xff]
    %v1138 = vld [vmem:[#allocation7 + $0xdc] sm:$0xf]
    %v1139 = vld [vmem:[#allocation7 + $0xe0] sm:$0xff]
    %v1140 = vld [vmem:[#allocation7 + $0xe8] sm:$0xff]
    %v1141 = vld [vmem:[#allocation7 + $0xf0] sm:$0xff]
    %v1142 = vld [vmem:[#allocation7 + $0xf8] sm:$0xf]
    %v1143 = vld [vmem:[#allocation7 + $0xfc] sm:$0xff]
    %v1144 = vld [vmem:[#allocation7 + $0x104] sm:$0xff]
    %v1145 = vld [vmem:[#allocation7 + $0x10c] sm:$0xff]
    %v1146 = vld [vmem:[#allocation7 + $0x114] sm:$0xf]
    %v1147 = vld [vmem:[#allocation7 + $0x118] sm:$0xff]
    %v1148 = vld [vmem:[#allocation7 + $0x120] sm:$0xff]
    %v1149 = vld [vmem:[#allocation7 + $0x128] sm:$0xff]
    %v1150 = vld [vmem:[#allocation7 + $0x130] sm:$0xf]
    %v1151 = vld [vmem:[#allocation7 + $0x134] sm:$0xff]
    %v1152 = vld [vmem:[#allocation7 + $0x13c] sm:$0xff]
    %v1153 = vld [vmem:[#allocation7 + $0x144] sm:$0xff]
    %v1154 = vld [vmem:[#allocation7 + $0x14c] sm:$0xf]
    %v1155 = vld [vmem:[#allocation7 + $0x150] sm:$0xff]
    %v1156 = vld [vmem:[#allocation7 + $0x158] sm:$0xff]
    %v1157 = vld [vmem:[#allocation7 + $0x160] sm:$0xff]
    %v1158 = vld [vmem:[#allocation7 + $0x168] sm:$0xf]
    %v1159 = vld [vmem:[#allocation7 + $0x16c] sm:$0xff]
    %v1160 = vld [vmem:[#allocation7 + $0x174] sm:$0xff]
    %v1161 = vld [vmem:[#allocation7 + $0x17c] sm:$0xff]
    %v1162 = vld [vmem:[#allocation7 + $0x184] sm:$0xf]
    %v1163 = vld [vmem:[#allocation7 + $0x188] sm:$0xff]
    %v1164 = vld [vmem:[#allocation7 + $0x190] sm:$0xff]
    %v1165 = vld [vmem:[#allocation7 + $0x198] sm:$0xff]
    %v1166 = vld [vmem:[#allocation7 + $0x1a0] sm:$0xf]
    %v1167 = vld [vmem:[#allocation7 + $0x1a4] sm:$0xff]
    %v1168 = vld [vmem:[#allocation7 + $0x1ac] sm:$0xff]
    %v1169 = vld [vmem:[#allocation7 + $0x1b4] sm:$0xff]
    %v1170 = vld [vmem:[#allocation7 + $0x1bc] sm:$0xf]
    %v1171 = vld [vmem:[%s13] sm:$0xff]
    %v1173 = vperm.slane %v1171, 0
    %v1174 = vperm.slane %v1171, 1
    %v1175 = vperm.slane %v1171, 2
    %v1176 = vperm.slane %v1171, 3
    %v1177 = vperm.slane %v1171, 4
    %v1178 = vperm.slane %v1171, 5
    %v1179 = vperm.slane %v1171, 6
    %v1251 = vunpack.c.l.b16 %v1107
    %v1252 = vunpack.c.h.b16 %v1107
    %v1253 = vunpack.c.l.b16 %v1108
    %v1254 = vunpack.c.h.b16 %v1108
    %v1255 = vunpack.c.l.b16 %v1109
    %v1256 = vunpack.c.h.b16 %v1109
    %v1257 = vunpack.c.l.b16 %v1110
    %v1258 = vunpack.c.l.b16 %v1111
    %v1259 = vunpack.c.h.b16 %v1111
    %v1260 = vunpack.c.l.b16 %v1112
    %v1261 = vunpack.c.h.b16 %v1112
    %v1262 = vunpack.c.l.b16 %v1113
    %v1263 = vunpack.c.h.b16 %v1113
    %v1264 = vunpack.c.l.b16 %v1114
    %v1265 = vunpack.c.l.b16 %v1115
    %v1266 = vunpack.c.h.b16 %v1115
    %v1267 = vunpack.c.l.b16 %v1116
    %v1268 = vunpack.c.h.b16 %v1116
    %v1269 = vunpack.c.l.b16 %v1117
    %v1270 = vunpack.c.h.b16 %v1117
    %v1271 = vunpack.c.l.b16 %v1118
    %v1272 = vunpack.c.l.b16 %v1119
    %v1273 = vunpack.c.h.b16 %v1119
    %v1274 = vunpack.c.l.b16 %v1120
    %v1275 = vunpack.c.h.b16 %v1120
    %v1276 = vunpack.c.l.b16 %v1121
    %v1277 = vunpack.c.h.b16 %v1121
    %v1278 = vunpack.c.l.b16 %v1122
    %v1279 = vunpack.c.l.b16 %v1123
    %v1280 = vunpack.c.h.b16 %v1123
    %v1281 = vunpack.c.l.b16 %v1124
    %v1282 = vunpack.c.h.b16 %v1124
    %v1283 = vunpack.c.l.b16 %v1125
    %v1284 = vunpack.c.h.b16 %v1125
    %v1285 = vunpack.c.l.b16 %v1126
    %v1286 = vunpack.c.l.b16 %v1127
    %v1287 = vunpack.c.h.b16 %v1127
    %v1288 = vunpack.c.l.b16 %v1128
    %v1289 = vunpack.c.h.b16 %v1128
    %v1290 = vunpack.c.l.b16 %v1129
    %v1291 = vunpack.c.h.b16 %v1129
    %v1292 = vunpack.c.l.b16 %v1130
    %v1293 = vunpack.c.l.b16 %v1131
    %v1294 = vunpack.c.h.b16 %v1131
    %v1295 = vunpack.c.l.b16 %v1132
    %v1296 = vunpack.c.h.b16 %v1132
    %v1297 = vunpack.c.l.b16 %v1133
    %v1298 = vunpack.c.h.b16 %v1133
    %v1299 = vunpack.c.l.b16 %v1134
    %v1300 = vunpack.c.l.b16 %v1135
    %v1301 = vunpack.c.h.b16 %v1135
    %v1302 = vunpack.c.l.b16 %v1136
    %v1303 = vunpack.c.h.b16 %v1136
    %v1304 = vunpack.c.l.b16 %v1137
    %v1305 = vunpack.c.h.b16 %v1137
    %v1306 = vunpack.c.l.b16 %v1138
    %v1307 = vunpack.c.l.b16 %v1139
    %v1308 = vunpack.c.h.b16 %v1139
    %v1309 = vunpack.c.l.b16 %v1140
    %v1310 = vunpack.c.h.b16 %v1140
    %v1311 = vunpack.c.l.b16 %v1141
    %v1312 = vunpack.c.h.b16 %v1141
    %v1313 = vunpack.c.l.b16 %v1142
    %v1314 = vunpack.c.l.b16 %v1143
    %v1315 = vunpack.c.h.b16 %v1143
    %v1316 = vunpack.c.l.b16 %v1144
    %v1317 = vunpack.c.h.b16 %v1144
    %v1318 = vunpack.c.l.b16 %v1145
    %v1319 = vunpack.c.h.b16 %v1145
    %v1320 = vunpack.c.l.b16 %v1146
    %v1321 = vunpack.c.l.b16 %v1147
    %v1322 = vunpack.c.h.b16 %v1147
    %v1323 = vunpack.c.l.b16 %v1148
    %v1324 = vunpack.c.h.b16 %v1148
    %v1325 = vunpack.c.l.b16 %v1149
    %v1326 = vunpack.c.h.b16 %v1149
    %v1327 = vunpack.c.l.b16 %v1150
    %v1328 = vunpack.c.l.b16 %v1151
    %v1329 = vunpack.c.h.b16 %v1151
    %v1330 = vunpack.c.l.b16 %v1152
    %v1331 = vunpack.c.h.b16 %v1152
    %v1332 = vunpack.c.l.b16 %v1153
    %v1333 = vunpack.c.h.b16 %v1153
    %v1334 = vunpack.c.l.b16 %v1154
    %v1335 = vunpack.c.l.b16 %v1155
    %v1336 = vunpack.c.h.b16 %v1155
    %v1337 = vunpack.c.l.b16 %v1156
    %v1338 = vunpack.c.h.b16 %v1156
    %v1339 = vunpack.c.l.b16 %v1157
    %v1340 = vunpack.c.h.b16 %v1157
    %v1341 = vunpack.c.l.b16 %v1158
    %v1342 = vunpack.c.l.b16 %v1159
    %v1343 = vunpack.c.h.b16 %v1159
    %v1344 = vunpack.c.l.b16 %v1160
    %v1345 = vunpack.c.h.b16 %v1160
    %v1346 = vunpack.c.l.b16 %v1161
    %v1347 = vunpack.c.h.b16 %v1161
    %v1348 = vunpack.c.l.b16 %v1162
    %v1349 = vunpack.c.l.b16 %v1163
    %v1350 = vunpack.c.h.b16 %v1163
    %v1351 = vunpack.c.l.b16 %v1164
    %v1352 = vunpack.c.h.b16 %v1164
    %v1353 = vunpack.c.l.b16 %v1165
    %v1354 = vunpack.c.h.b16 %v1165
    %v1355 = vunpack.c.l.b16 %v1166
    %v1356 = vunpack.c.l.b16 %v1167
    %v1357 = vunpack.c.h.b16 %v1167
    %v1358 = vunpack.c.l.b16 %v1168
    %v1359 = vunpack.c.h.b16 %v1168
    %v1360 = vunpack.c.l.b16 %v1169
    %v1361 = vunpack.c.h.b16 %v1169
    %v1362 = vunpack.c.l.b16 %v1170
    %v1363 = vpack.c.b16 %v1258, %v1251
    %v1364 = vpack.c.b16 %v1259, %v1252
    %v1365 = vpack.c.b16 %v1260, %v1253
    %v1366 = vpack.c.b16 %v1261, %v1254
    %v1367 = vpack.c.b16 %v1262, %v1255
    %v1368 = vpack.c.b16 %v1263, %v1256
    %v1369 = vpack.c.b16 %v1264, %v1257
    %v1370 = vpack.c.b16 %v1272, %v1265
    %v1371 = vpack.c.b16 %v1273, %v1266
    %v1372 = vpack.c.b16 %v1274, %v1267
    %v1373 = vpack.c.b16 %v1275, %v1268
    %v1374 = vpack.c.b16 %v1276, %v1269
    %v1375 = vpack.c.b16 %v1277, %v1270
    %v1376 = vpack.c.b16 %v1278, %v1271
    %v1377 = vpack.c.b16 %v1286, %v1279
    %v1378 = vpack.c.b16 %v1287, %v1280
    %v1379 = vpack.c.b16 %v1288, %v1281
    %v1380 = vpack.c.b16 %v1289, %v1282
    %v1381 = vpack.c.b16 %v1290, %v1283
    %v1382 = vpack.c.b16 %v1291, %v1284
    %v1383 = vpack.c.b16 %v1292, %v1285
    %v1384 = vpack.c.b16 %v1300, %v1293
    %v1385 = vpack.c.b16 %v1301, %v1294
    %v1386 = vpack.c.b16 %v1302, %v1295
    %v1387 = vpack.c.b16 %v1303, %v1296
    %v1388 = vpack.c.b16 %v1304, %v1297
    %v1389 = vpack.c.b16 %v1305, %v1298
    %v1390 = vpack.c.b16 %v1306, %v1299
    %v1391 = vpack.c.b16 %v1314, %v1307
    %v1392 = vpack.c.b16 %v1315, %v1308
    %v1393 = vpack.c.b16 %v1316, %v1309
    %v1394 = vpack.c.b16 %v1317, %v1310
    %v1395 = vpack.c.b16 %v1318, %v1311
    %v1396 = vpack.c.b16 %v1319, %v1312
    %v1397 = vpack.c.b16 %v1320, %v1313
    %v1398 = vpack.c.b16 %v1328, %v1321
    %v1399 = vpack.c.b16 %v1329, %v1322
    %v1400 = vpack.c.b16 %v1330, %v1323
    %v1401 = vpack.c.b16 %v1331, %v1324
    %v1402 = vpack.c.b16 %v1332, %v1325
    %v1403 = vpack.c.b16 %v1333, %v1326
    %v1404 = vpack.c.b16 %v1334, %v1327
    %v1405 = vpack.c.b16 %v1342, %v1335
    %v1406 = vpack.c.b16 %v1343, %v1336
    %v1407 = vpack.c.b16 %v1344, %v1337
    %v1408 = vpack.c.b16 %v1345, %v1338
    %v1409 = vpack.c.b16 %v1346, %v1339
    %v1410 = vpack.c.b16 %v1347, %v1340
    %v1411 = vpack.c.b16 %v1348, %v1341
    %v1412 = vpack.c.b16 %v1356, %v1349
    %v1413 = vpack.c.b16 %v1357, %v1350
    %v1414 = vpack.c.b16 %v1358, %v1351
    %v1415 = vpack.c.b16 %v1359, %v1352
    %v1416 = vpack.c.b16 %v1360, %v1353
    %v1417 = vpack.c.b16 %v1361, %v1354
    %v1418 = vpack.c.b16 %v1362, %v1355
    %1475 = vmatpush.bf16.msra.mxu0 %v1412
    %1476 = vmatpush.bf16.msra.mxu0 %v1405
    %1477 = vmatpush.bf16.msra.mxu0 %v1398
    %1478 = vmatpush.bf16.msra.mxu0 %v1391
    %1479 = vmatpush.bf16.msra.mxu0 %v1384
    %1480 = vmatpush.bf16.msra.mxu0 %v1377
    %1481 = vmatpush.bf16.msra.mxu0 %v1370
    %1482 = vmatpush.bf16.msra.mxu0 %v1363
    %1483 = vmatmul.bf16.gmra.mxu0 %v1106
    %v1484 = vpop.f32.mrf.mxu0
    %v1485 = vadd.f32 %v1173, %v1484
    %v1486 = vpop.f32.mrf.mxu0
    %v1487 = vadd.f32 %v1173, %v1486
    %1488 = vdwg.mxu0
    %1489 = vmatpush.bf16.msra.mxu0 %v1413
    %1490 = vmatpush.bf16.msra.mxu0 %v1406
    %1491 = vmatpush.bf16.msra.mxu0 %v1399
    %1492 = vmatpush.bf16.msra.mxu0 %v1392
    %1493 = vmatpush.bf16.msra.mxu0 %v1385
    %1494 = vmatpush.bf16.msra.mxu0 %v1378
    %1495 = vmatpush.bf16.msra.mxu0 %v1371
    %1496 = vmatpush.bf16.msra.mxu0 %v1364
    %1497 = vmatmul.bf16.gmra.mxu0 %v1106
    %v1498 = vpop.f32.mrf.mxu0
    %v1499 = vadd.f32 %v1174, %v1498
    %v1500 = vpop.f32.mrf.mxu0
    %v1501 = vadd.f32 %v1174, %v1500
    %1502 = vdwg.mxu0
    %1503 = vmatpush.bf16.msra.mxu0 %v1414
    %1504 = vmatpush.bf16.msra.mxu0 %v1407
    %1505 = vmatpush.bf16.msra.mxu0 %v1400
    %1506 = vmatpush.bf16.msra.mxu0 %v1393
    %1507 = vmatpush.bf16.msra.mxu0 %v1386
    %1508 = vmatpush.bf16.msra.mxu0 %v1379
    %1509 = vmatpush.bf16.msra.mxu0 %v1372
    %1510 = vmatpush.bf16.msra.mxu0 %v1365
    %1511 = vmatmul.bf16.gmra.mxu0 %v1106
    %v1512 = vpop.f32.mrf.mxu0
    %v1513 = vadd.f32 %v1175, %v1512
    %v1514 = vpop.f32.mrf.mxu0
    %v1515 = vadd.f32 %v1175, %v1514
    %1516 = vdwg.mxu0
    %1517 = vmatpush.bf16.msra.mxu0 %v1415
    %1518 = vmatpush.bf16.msra.mxu0 %v1408
    %1519 = vmatpush.bf16.msra.mxu0 %v1401
    %1520 = vmatpush.bf16.msra.mxu0 %v1394
    %1521 = vmatpush.bf16.msra.mxu0 %v1387
    %1522 = vmatpush.bf16.msra.mxu0 %v1380
    %1523 = vmatpush.bf16.msra.mxu0 %v1373
    %1524 = vmatpush.bf16.msra.mxu0 %v1366
    %1525 = vmatmul.bf16.gmra.mxu0 %v1106
    %v1526 = vpop.f32.mrf.mxu0
    %v1527 = vadd.f32 %v1176, %v1526
    %v1528 = vpop.f32.mrf.mxu0
    %v1529 = vadd.f32 %v1176, %v1528
    %1530 = vdwg.mxu0
    %1531 = vmatpush.bf16.msra.mxu0 %v1416
    %1532 = vmatpush.bf16.msra.mxu0 %v1409
    %1533 = vmatpush.bf16.msra.mxu0 %v1402
    %1534 = vmatpush.bf16.msra.mxu0 %v1395
    %1535 = vmatpush.bf16.msra.mxu0 %v1388
    %1536 = vmatpush.bf16.msra.mxu0 %v1381
    %1537 = vmatpush.bf16.msra.mxu0 %v1374
    %1538 = vmatpush.bf16.msra.mxu0 %v1367
    %1539 = vmatmul.bf16.gmra.mxu0 %v1106
    %v1540 = vpop.f32.mrf.mxu0
    %v1541 = vadd.f32 %v1177, %v1540
    %v1542 = vpop.f32.mrf.mxu0
    %v1543 = vadd.f32 %v1177, %v1542
    %1544 = vdwg.mxu0
    %1545 = vmatpush.bf16.msra.mxu0 %v1417
    %1546 = vmatpush.bf16.msra.mxu0 %v1410
    %1547 = vmatpush.bf16.msra.mxu0 %v1403
    %1548 = vmatpush.bf16.msra.mxu0 %v1396
    %1549 = vmatpush.bf16.msra.mxu0 %v1389
    %1550 = vmatpush.bf16.msra.mxu0 %v1382
    %1551 = vmatpush.bf16.msra.mxu0 %v1375
    %1552 = vmatpush.bf16.msra.mxu0 %v1368
    %1553 = vmatmul.bf16.gmra.mxu0 %v1106
    %v1554 = vpop.f32.mrf.mxu0
    %v1555 = vadd.f32 %v1178, %v1554
    %v1556 = vpop.f32.mrf.mxu0
    %v1557 = vadd.f32 %v1178, %v1556
    %1558 = vdwg.mxu0
    %1559 = vmatpush.bf16.msra.mxu0 %v1418
    %1560 = vmatpush.bf16.msra.mxu0 %v1411
    %1561 = vmatpush.bf16.msra.mxu0 %v1404
    %1562 = vmatpush.bf16.msra.mxu0 %v1397
    %1563 = vmatpush.bf16.msra.mxu0 %v1390
    %1564 = vmatpush.bf16.msra.mxu0 %v1383
    %1565 = vmatpush.bf16.msra.mxu0 %v1376
    %1566 = vmatpush.bf16.msra.mxu0 %v1369
    %1567 = vmatmul.bf16.gmra.mxu0 %v1106
    %v1568 = vpop.f32.mrf.mxu0
    %v1569 = vadd.f32 %v1179, %v1568
    %v1570 = vpop.f32.mrf.mxu0
    %v1571 = vadd.f32 %v1179, %v1570
    %1572 = vdwg.mxu0
    %v1573 = vxor.u32 %v1485, 2147483648
    %v1574 = vxor.u32 %v1499, 2147483648
    %v1575 = vxor.u32 %v1513, 2147483648
    %v1576 = vxor.u32 %v1527, 2147483648
    %v1577 = vxor.u32 %v1541, 2147483648
    %v1578 = vxor.u32 %v1555, 2147483648
    %v1579 = vxor.u32 %v1569, 2147483648
    %v1580 = vxor.u32 %v1487, 2147483648
    %v1581 = vxor.u32 %v1501, 2147483648
    %v1582 = vxor.u32 %v1515, 2147483648
    %v1583 = vxor.u32 %v1529, 2147483648
    %v1584 = vxor.u32 %v1543, 2147483648
    %v1585 = vxor.u32 %v1557, 2147483648
    %v1586 = vxor.u32 %v1571, 2147483648
    %v1587 = vmul.f32 %v1573, 1.442695
    %v1588 = vpow.pop %v1587
    %v1589 = vmul.f32 %v1574, 1.442695
    %v1590 = vpow.pop %v1589
    %v1591 = vmul.f32 %v1575, 1.442695
    %v1592 = vpow.pop %v1591
    %v1593 = vmul.f32 %v1576, 1.442695
    %v1594 = vpow.pop %v1593
    %v1595 = vmul.f32 %v1577, 1.442695
    %v1596 = vpow.pop %v1595
    %v1597 = vmul.f32 %v1578, 1.442695
    %v1598 = vpow.pop %v1597
    %v1599 = vmul.f32 %v1579, 1.442695
    %v1600 = vpow.pop %v1599
    %v1601 = vmul.f32 %v1580, 1.442695
    %v1602 = vpow.pop %v1601
    %v1603 = vmul.f32 %v1581, 1.442695
    %v1604 = vpow.pop %v1603
    %v1605 = vmul.f32 %v1582, 1.442695
    %v1606 = vpow.pop %v1605
    %v1607 = vmul.f32 %v1583, 1.442695
    %v1608 = vpow.pop %v1607
    %v1609 = vmul.f32 %v1584, 1.442695
    %v1610 = vpow.pop %v1609
    %v1611 = vmul.f32 %v1585, 1.442695
    %v1612 = vpow.pop %v1611
    %v1613 = vmul.f32 %v1586, 1.442695
    %v1614 = vpow.pop %v1613
    %v1615 = vadd.f32 %v1588, 1.0
    %v1616 = vadd.f32 %v1590, 1.0
    %v1617 = vadd.f32 %v1592, 1.0
    %v1618 = vadd.f32 %v1594, 1.0
    %v1619 = vadd.f32 %v1596, 1.0
    %v1620 = vadd.f32 %v1598, 1.0
    %v1621 = vadd.f32 %v1600, 1.0
    %v1622 = vadd.f32 %v1602, 1.0
    %v1623 = vadd.f32 %v1604, 1.0
    %v1624 = vadd.f32 %v1606, 1.0
    %v1625 = vadd.f32 %v1608, 1.0
    %v1626 = vadd.f32 %v1610, 1.0
    %v1627 = vadd.f32 %v1612, 1.0
    %v1628 = vadd.f32 %v1614, 1.0
    %v1629 = vrcp.pop %v1615
    %v1630 = vmul.f32 %v1615, %v1629
    %v1631 = vsub.f32 1.0, %v1630
    %v1632 = vmul.f32 %v1629, %v1631
    %v1633 = vadd.f32 %v1629, %v1632
    %vm1634 = vweird.f32 %v1615
    %vm1635 = vweird.f32 %v1629
    %vm1636 = vmor %vm1634, %vm1635
    %v1637 = vsel %vm1636, %v1629, %v1633
    %v1638 = vand.u32 2147483647, %v1615
    %vm1639 = vcmp.eq.f32.partialorder %v1638, 8.507059e+37
    %v1640 = vand.u32 %v1615, 2147483648
    %v1641 = vor.u32 1.1754944e-38, %v1640
    %v1642 = vsel %vm1639, %v1641, %v1637
    %v1643 = vmul.f32 1.0, %v1642
    %v1644 = vrcp.pop %v1616
    %v1645 = vmul.f32 %v1616, %v1644
    %v1646 = vsub.f32 1.0, %v1645
    %v1647 = vmul.f32 %v1644, %v1646
    %v1648 = vadd.f32 %v1644, %v1647
    %vm1649 = vweird.f32 %v1616
    %vm1650 = vweird.f32 %v1644
    %vm1651 = vmor %vm1649, %vm1650
    %v1652 = vsel %vm1651, %v1644, %v1648
    %v1653 = vand.u32 2147483647, %v1616
    %vm1654 = vcmp.eq.f32.partialorder %v1653, 8.507059e+37
    %v1655 = vand.u32 %v1616, 2147483648
    %v1656 = vor.u32 1.1754944e-38, %v1655
    %v1657 = vsel %vm1654, %v1656, %v1652
    %v1658 = vmul.f32 1.0, %v1657
    %v1659 = vrcp.pop %v1617
    %v1660 = vmul.f32 %v1617, %v1659
    %v1661 = vsub.f32 1.0, %v1660
    %v1662 = vmul.f32 %v1659, %v1661
    %v1663 = vadd.f32 %v1659, %v1662
    %vm1664 = vweird.f32 %v1617
    %vm1665 = vweird.f32 %v1659
    %vm1666 = vmor %vm1664, %vm1665
    %v1667 = vsel %vm1666, %v1659, %v1663
    %v1668 = vand.u32 2147483647, %v1617
    %vm1669 = vcmp.eq.f32.partialorder %v1668, 8.507059e+37
    %v1670 = vand.u32 %v1617, 2147483648
    %v1671 = vor.u32 1.1754944e-38, %v1670
    %v1672 = vsel %vm1669, %v1671, %v1667
    %v1673 = vmul.f32 1.0, %v1672
    %v1674 = vrcp.pop %v1618
    %v1675 = vmul.f32 %v1618, %v1674
    %v1676 = vsub.f32 1.0, %v1675
    %v1677 = vmul.f32 %v1674, %v1676
    %v1678 = vadd.f32 %v1674, %v1677
    %vm1679 = vweird.f32 %v1618
    %vm1680 = vweird.f32 %v1674
    %vm1681 = vmor %vm1679, %vm1680
    %v1682 = vsel %vm1681, %v1674, %v1678
    %v1683 = vand.u32 2147483647, %v1618
    %vm1684 = vcmp.eq.f32.partialorder %v1683, 8.507059e+37
    %v1685 = vand.u32 %v1618, 2147483648
    %v1686 = vor.u32 1.1754944e-38, %v1685
    %v1687 = vsel %vm1684, %v1686, %v1682
    %v1688 = vmul.f32 1.0, %v1687
    %v1689 = vrcp.pop %v1619
    %v1690 = vmul.f32 %v1619, %v1689
    %v1691 = vsub.f32 1.0, %v1690
    %v1692 = vmul.f32 %v1689, %v1691
    %v1693 = vadd.f32 %v1689, %v1692
    %vm1694 = vweird.f32 %v1619
    %vm1695 = vweird.f32 %v1689
    %vm1696 = vmor %vm1694, %vm1695
    %v1697 = vsel %vm1696, %v1689, %v1693
    %v1698 = vand.u32 2147483647, %v1619
    %vm1699 = vcmp.eq.f32.partialorder %v1698, 8.507059e+37
    %v1700 = vand.u32 %v1619, 2147483648
    %v1701 = vor.u32 1.1754944e-38, %v1700
    %v1702 = vsel %vm1699, %v1701, %v1697
    %v1703 = vmul.f32 1.0, %v1702
    %v1704 = vrcp.pop %v1620
    %v1705 = vmul.f32 %v1620, %v1704
    %v1706 = vsub.f32 1.0, %v1705
    %v1707 = vmul.f32 %v1704, %v1706
    %v1708 = vadd.f32 %v1704, %v1707
    %vm1709 = vweird.f32 %v1620
    %vm1710 = vweird.f32 %v1704
    %vm1711 = vmor %vm1709, %vm1710
    %v1712 = vsel %vm1711, %v1704, %v1708
    %v1713 = vand.u32 2147483647, %v1620
    %vm1714 = vcmp.eq.f32.partialorder %v1713, 8.507059e+37
    %v1715 = vand.u32 %v1620, 2147483648
    %v1716 = vor.u32 1.1754944e-38, %v1715
    %v1717 = vsel %vm1714, %v1716, %v1712
    %v1718 = vmul.f32 1.0, %v1717
    %v1719 = vrcp.pop %v1621
    %v1720 = vmul.f32 %v1621, %v1719
    %v1721 = vsub.f32 1.0, %v1720
    %v1722 = vmul.f32 %v1719, %v1721
    %v1723 = vadd.f32 %v1719, %v1722
    %vm1724 = vweird.f32 %v1621
    %vm1725 = vweird.f32 %v1719
    %vm1726 = vmor %vm1724, %vm1725
    %v1727 = vsel %vm1726, %v1719, %v1723
    %v1728 = vand.u32 2147483647, %v1621
    %vm1729 = vcmp.eq.f32.partialorder %v1728, 8.507059e+37
    %v1730 = vand.u32 %v1621, 2147483648
    %v1731 = vor.u32 1.1754944e-38, %v1730
    %v1732 = vsel %vm1729, %v1731, %v1727
    %v1733 = vmul.f32 1.0, %v1732
    %v1734 = vrcp.pop %v1622
    %v1735 = vmul.f32 %v1622, %v1734
    %v1736 = vsub.f32 1.0, %v1735
    %v1737 = vmul.f32 %v1734, %v1736
    %v1738 = vadd.f32 %v1734, %v1737
    %vm1739 = vweird.f32 %v1622
    %vm1740 = vweird.f32 %v1734
    %vm1741 = vmor %vm1739, %vm1740
    %v1742 = vsel %vm1741, %v1734, %v1738
    %v1743 = vand.u32 2147483647, %v1622
    %vm1744 = vcmp.eq.f32.partialorder %v1743, 8.507059e+37
    %v1745 = vand.u32 %v1622, 2147483648
    %v1746 = vor.u32 1.1754944e-38, %v1745
    %v1747 = vsel %vm1744, %v1746, %v1742
    %v1748 = vmul.f32 1.0, %v1747
    %v1749 = vrcp.pop %v1623
    %v1750 = vmul.f32 %v1623, %v1749
    %v1751 = vsub.f32 1.0, %v1750
    %v1752 = vmul.f32 %v1749, %v1751
    %v1753 = vadd.f32 %v1749, %v1752
    %vm1754 = vweird.f32 %v1623
    %vm1755 = vweird.f32 %v1749
    %vm1756 = vmor %vm1754, %vm1755
    %v1757 = vsel %vm1756, %v1749, %v1753
    %v1758 = vand.u32 2147483647, %v1623
    %vm1759 = vcmp.eq.f32.partialorder %v1758, 8.507059e+37
    %v1760 = vand.u32 %v1623, 2147483648
    %v1761 = vor.u32 1.1754944e-38, %v1760
    %v1762 = vsel %vm1759, %v1761, %v1757
    %v1763 = vmul.f32 1.0, %v1762
    %v1764 = vrcp.pop %v1624
    %v1765 = vmul.f32 %v1624, %v1764
    %v1766 = vsub.f32 1.0, %v1765
    %v1767 = vmul.f32 %v1764, %v1766
    %v1768 = vadd.f32 %v1764, %v1767
    %vm1769 = vweird.f32 %v1624
    %vm1770 = vweird.f32 %v1764
    %vm1771 = vmor %vm1769, %vm1770
    %v1772 = vsel %vm1771, %v1764, %v1768
    %v1773 = vand.u32 2147483647, %v1624
    %vm1774 = vcmp.eq.f32.partialorder %v1773, 8.507059e+37
    %v1775 = vand.u32 %v1624, 2147483648
    %v1776 = vor.u32 1.1754944e-38, %v1775
    %v1777 = vsel %vm1774, %v1776, %v1772
    %v1778 = vmul.f32 1.0, %v1777
    %v1779 = vrcp.pop %v1625
    %v1780 = vmul.f32 %v1625, %v1779
    %v1781 = vsub.f32 1.0, %v1780
    %v1782 = vmul.f32 %v1779, %v1781
    %v1783 = vadd.f32 %v1779, %v1782
    %vm1784 = vweird.f32 %v1625
    %vm1785 = vweird.f32 %v1779
    %vm1786 = vmor %vm1784, %vm1785
    %v1787 = vsel %vm1786, %v1779, %v1783
    %v1788 = vand.u32 2147483647, %v1625
    %vm1789 = vcmp.eq.f32.partialorder %v1788, 8.507059e+37
    %v1790 = vand.u32 %v1625, 2147483648
    %v1791 = vor.u32 1.1754944e-38, %v1790
    %v1792 = vsel %vm1789, %v1791, %v1787
    %v1793 = vmul.f32 1.0, %v1792
    %v1794 = vrcp.pop %v1626
    %v1795 = vmul.f32 %v1626, %v1794
    %v1796 = vsub.f32 1.0, %v1795
    %v1797 = vmul.f32 %v1794, %v1796
    %v1798 = vadd.f32 %v1794, %v1797
    %vm1799 = vweird.f32 %v1626
    %vm1800 = vweird.f32 %v1794
    %vm1801 = vmor %vm1799, %vm1800
    %v1802 = vsel %vm1801, %v1794, %v1798
    %v1803 = vand.u32 2147483647, %v1626
    %vm1804 = vcmp.eq.f32.partialorder %v1803, 8.507059e+37
    %v1805 = vand.u32 %v1626, 2147483648
    %v1806 = vor.u32 1.1754944e-38, %v1805
    %v1807 = vsel %vm1804, %v1806, %v1802
    %v1808 = vmul.f32 1.0, %v1807
    %v1809 = vrcp.pop %v1627
    %v1810 = vmul.f32 %v1627, %v1809
    %v1811 = vsub.f32 1.0, %v1810
    %v1812 = vmul.f32 %v1809, %v1811
    %v1813 = vadd.f32 %v1809, %v1812
    %vm1814 = vweird.f32 %v1627
    %vm1815 = vweird.f32 %v1809
    %vm1816 = vmor %vm1814, %vm1815
    %v1817 = vsel %vm1816, %v1809, %v1813
    %v1818 = vand.u32 2147483647, %v1627
    %vm1819 = vcmp.eq.f32.partialorder %v1818, 8.507059e+37
    %v1820 = vand.u32 %v1627, 2147483648
    %v1821 = vor.u32 1.1754944e-38, %v1820
    %v1822 = vsel %vm1819, %v1821, %v1817
    %v1823 = vmul.f32 1.0, %v1822
    %v1824 = vrcp.pop %v1628
    %v1825 = vmul.f32 %v1628, %v1824
    %v1826 = vsub.f32 1.0, %v1825
    %v1827 = vmul.f32 %v1824, %v1826
    %v1828 = vadd.f32 %v1824, %v1827
    %vm1829 = vweird.f32 %v1628
    %vm1830 = vweird.f32 %v1824
    %vm1831 = vmor %vm1829, %vm1830
    %v1832 = vsel %vm1831, %v1824, %v1828
    %v1833 = vand.u32 2147483647, %v1628
    %vm1834 = vcmp.eq.f32.partialorder %v1833, 8.507059e+37
    %v1835 = vand.u32 %v1628, 2147483648
    %v1836 = vor.u32 1.1754944e-38, %v1835
    %v1837 = vsel %vm1834, %v1836, %v1832
    %v1838 = vmul.f32 1.0, %v1837
    %v1839 = vpack.c.bf16 %v1658, %v1643
    %v1840 = vpack.c.bf16 %v1688, %v1673
    %v1841 = vpack.c.bf16 %v1718, %v1703
    %v1842 = vpack.c.bf16 %v1733, %v1733
    %v1843 = vpack.c.bf16 %v1763, %v1748
    %v1844 = vpack.c.bf16 %v1793, %v1778
    %v1845 = vpack.c.bf16 %v1823, %v1808
    %v1846 = vpack.c.bf16 %v1838, %v1838
    %1847 = vst [vmem:[%s14] sm:$0xff] %v1839
    %1848 = vst [vmem:[%s14 + $0x8] sm:$0xff] %v1840
    %1849 = vst [vmem:[%s14 + $0x10] sm:$0xff] %v1841
    %1850 = vst [vmem:[%s14 + $0x18] sm:$0xf] %v1842
    %1851 = vst [vmem:[%s14 + $0x1c] sm:$0xff] %v1843
    %1852 = vst [vmem:[%s14 + $0x24] sm:$0xff] %v1844
    %1853 = vst [vmem:[%s14 + $0x2c] sm:$0xff] %v1845
    %1854 = vst [vmem:[%s14 + $0x34] sm:$0xf] %v1846
    %1855 = vst [vmem:[%s15] sm:$0xff] %v906
    %1856 = vst [vmem:[%s15 + $0x8] sm:$0xff] %v920
    %1857 = vst [vmem:[%s15 + $0x10] sm:$0xff] %v908
    %1858 = vst [vmem:[%s15 + $0x18] sm:$0xff] %v922
    // Predicated region
    $region74: #{_lambda_.1} parent=1 // pred_check
      _
    $region75: #{_lambda_.1} parent=1 // pred_check_branch
      %1860 = sbr.rel (0) target = $region77
    $region76: #{_lambda_.1} parent=1 // pred_region
      _
    $region77: #{_lambda_.1} parent=1 // pred_fallthru
      _
    // Predicated region
    $region78: #{_lambda_.1} parent=1 // pred_check
      _
    $region79: #{_lambda_.1} parent=1 // pred_check_branch
      %1862 = sbr.rel (0) target = $region81
    $region80: #{_lambda_.1} parent=1 // pred_region
      _
    $region81: #{_lambda_.1} parent=1 // pred_fallthru
      _
    // Predicated region
    $region82: #{_lambda_.1} parent=1 // pred_check
      _
    $region83: #{_lambda_.1} parent=1 // pred_check_branch
      %1864 = sbr.rel (0) target = $region85
    $region84: #{_lambda_.1} parent=1 // pred_region
      _
    $region85: #{_lambda_.1} parent=1 // pred_fallthru
      _
    // Predicated region
    $region86: #{_lambda_.1} parent=1 // pred_check
      _
    $region87: #{_lambda_.1} parent=1 // pred_check_branch
      %1866 = sbr.rel (0) target = $region89
    $region88: #{_lambda_.1} parent=1 // pred_region
      _
    $region89: #{_lambda_.1} parent=1 // pred_fallthru
      _
    %1867 = vsyncpa [#allocation3], 1
    %1868 = vsyncpa [#allocation5], 1
    %1869 = vsyncpa [#allocation8], 1

</llo_original>
